<compile_context>
chip_gen: v6e
topology: v6e:2x2x1
jax: 0.10.0
libtpu: 0.0.40
codegen_flags: <defaults>
</compile_context>

<pallas_src>
import jax
import jax.numpy as jnp
import numpy as np
from jax.experimental import pallas as pl
from jax.experimental.pallas import tpu as pltpu


def _round_up(x, m):
    return (x + m - 1) // m * m


def _elu(x):
    # F.elu with alpha=1; clamp exp arg to avoid overflow on the positive branch.
    return jnp.where(x > 0, x, jnp.exp(jnp.minimum(x, 0.0)) - 1.0)


# ---------------------------------------------------------------------------
# Fused kernel: embedding gather + Conv2d(1,f,(n,E)) + ELU + max-pool (all convs)
#               + highway layer + output Linear, lane-padded output.
# ---------------------------------------------------------------------------
def make_fused_kernel(B, T, V_pad, E, conv_meta, S, out_pad):
    n_conv = len(conv_meta)

    def kernel(*refs):
        tok_ref, table_ref = refs[0], refs[1]
        conv_refs = refs[2:2 + 2 * n_conv]
        wh_ref, bh_ref, wo_ref, bo_ref, out_ref = refs[2 + 2 * n_conv:]

        # ---- embedding gather as one-hot @ table (MXU), keeps emb in VMEM ----
        tok = tok_ref[...]                                           # (B, T) i32
        pos = jax.lax.broadcasted_iota(jnp.int32, (B, T, V_pad), 2)
        onehot = (pos == tok[:, :, None]).astype(jnp.float32)        # (B, T, V_pad)
        emb = jnp.einsum('btv,ve->bte', onehot, table_ref[...],
                         preferred_element_type=jnp.float32)         # (B, T, E)

        # ---- convs: one K = n*E MXU contraction each, then ELU + max-pool ----
        pooled = []
        for ci, (n, f) in enumerate(conv_meta):
            w_ref = conv_refs[2 * ci]        # (n*E, f)  stacked over window offsets
            b_ref = conv_refs[2 * ci + 1]    # (1, f)
            t_out = T - n + 1
            lhs = jnp.concatenate(
                [emb[:, i:i + t_out, :] for i in range(n)], axis=-1)  # (B, t_out, n*E)
            y = jnp.einsum('btk,kf->btf', lhs, w_ref[...],
                           preferred_element_type=jnp.float32)
            y = y + b_ref[...][None]                                  # (1,1,f) broadcast
            act = _elu(y)                                             # F.elu(conv(x))
            pooled.append(jnp.max(act, axis=1))                       # max_pool1d -> (B, f)
        x = jnp.concatenate(pooled, axis=-1)                          # torch.cat -> (B, S)

        # ---- highway layer + output linear ----
        h = jnp.dot(x, wh_ref[...], preferred_element_type=jnp.float32) + bh_ref[...]
        t_gate = pl.reciprocal(1.0 + jnp.exp(-h), approx=True)        # sigmoid (EUP path)
        x2 = t_gate * _elu(h) + (1.0 - t_gate) * x                    # highway combine
        # dropout p=0 (module default) -> identity
        out_ref[...] = jnp.dot(x2, wo_ref[...],
                               preferred_element_type=jnp.float32) + bo_ref[...]

    return kernel


def discriminator_forward(tokens, params):
    B, T = tokens.shape
    table = params['embedding']
    V, E = table.shape
    V_pad = _round_up(V, 8)
    if V_pad != V:
        table = jnp.pad(table, ((0, V_pad - V), (0, 0)))

    conv_meta = []
    conv_args = []
    for (w, b) in params['convs']:           # w: (n, E, f), b: (1, f)
        n, _, f = w.shape
        conv_meta.append((n, f))
        conv_args.append(w.reshape(n * E, f))       # stack window offsets -> K = n*E
        conv_args.append(b.reshape(1, f))
    S = sum(f for _, f in conv_meta)

    OUT_PAD = 128                                   # lane-dense output store
    wo_pad = jnp.pad(params['wo'], ((0, 0), (0, OUT_PAD - params['wo'].shape[1])))
    bo_pad = jnp.pad(params['bo'], ((0, 0), (0, OUT_PAD - params['bo'].shape[1])))

    in_specs = [
        pl.BlockSpec((B, T), lambda i: (0, 0)),          # tokens
        pl.BlockSpec((V_pad, E), lambda i: (0, 0)),      # embedding table
    ]
    inputs = [tokens.astype(jnp.int32), table]
    for (n, f) in conv_meta:
        in_specs.append(pl.BlockSpec((n * E, f), lambda i: (0, 0)))
        in_specs.append(pl.BlockSpec((1, f), lambda i: (0, 0)))
    inputs.extend(conv_args)
    in_specs.extend([
        pl.BlockSpec((S, S), lambda i: (0, 0)),          # wh
        pl.BlockSpec((1, S), lambda i: (0, 0)),          # bh
        pl.BlockSpec((S, OUT_PAD), lambda i: (0, 0)),    # wo (lane padded)
        pl.BlockSpec((1, OUT_PAD), lambda i: (0, 0)),    # bo (lane padded)
    ])
    inputs.extend([params['wh'], params['bh'], wo_pad, bo_pad])

    out = pl.pallas_call(
        make_fused_kernel(B, T, V_pad, E, tuple(conv_meta), S, OUT_PAD),
        grid=(1,),
        in_specs=in_specs,
        out_specs=pl.BlockSpec((B, OUT_PAD), lambda i: (0, 0)),
        out_shape=jax.ShapeDtypeStruct((B, OUT_PAD), jnp.float32),
        compiler_params=pltpu.CompilerParams(
            dimension_semantics=("arbitrary",)),
    )(*inputs)
    return out[:, :1]                                    # (B, 1)


# ---------------------------------------------------------------------------
# Pure-JAX reference (mirrors the PyTorch forward)
# ---------------------------------------------------------------------------
def reference_forward(tokens, params):
    emb = params['embedding'][tokens]
    pooled = []
    for (w, b) in params['convs']:
        n = w.shape[0]
        t_out = emb.shape[1] - n + 1
        acc = sum(jnp.einsum('bte,ef->btf', emb[:, i:i + t_out, :], w[i])
                  for i in range(n)) + b
        pooled.append(jnp.max(_elu(acc), axis=1))
    x = jnp.concatenate(pooled, axis=1)
    h = x @ params['wh'] + params['bh']
    t = jax.nn.sigmoid(h)
    x2 = t * _elu(h) + (1.0 - t) * x
    return x2 @ params['wo'] + params['bo']


def init_params(key, vocab, embed_dim, convs):
    n_keys = 3 + len(convs)
    keys = jax.random.split(key, n_keys)
    embedding = jax.random.normal(keys[0], (vocab, embed_dim), jnp.float32) * 0.1
    conv_params = []
    for idx, (f, n) in enumerate(convs):
        w = jax.random.normal(keys[1 + idx], (n, embed_dim, f), jnp.float32) * 0.1
        b = jnp.full((1, f), 0.01, jnp.float32)
        conv_params.append((w, b))
    sum_filters = sum(f for f, _ in convs)
    wh = jax.random.normal(keys[1 + len(convs)], (sum_filters, sum_filters),
                           jnp.float32) * 0.1
    bh = jnp.full((1, sum_filters), 0.02, jnp.float32)
    wo = jax.random.normal(keys[2 + len(convs)], (sum_filters, 1), jnp.float32) * 0.1
    bo = jnp.full((1, 1), 0.03, jnp.float32)
    return {'embedding': embedding, 'convs': conv_params,
            'wh': wh, 'bh': bh, 'wo': wo, 'bo': bo}


if __name__ == "__main__":
    B, T, VOCAB, E = 2, 16, 50, 32
    CONVS = [(8, 3), (8, 4)]          # (num_filters, window) like the PyTorch `convs` arg

    key = jax.random.PRNGKey(0)
    k_tok, k_par = jax.random.split(key)
    tokens = jax.random.randint(k_tok, (B, T), 0, VOCAB, dtype=jnp.int32)
    params = init_params(k_par, VOCAB, E, CONVS)

    out = discriminator_forward(tokens, params)
    out = jax.block_until_ready(out)
    assert out.shape == (B, 1)

    ref = reference_forward(tokens, params)
    np.testing.assert_allclose(np.asarray(out), np.asarray(ref), rtol=2e-3, atol=2e-3)

    print("KERNEL_OK")
</pallas_src>

<mosaic_0001>
module attributes {stable_mosaic.version = 11 : i64} {
  func.func @kernel(%arg0: i32, %arg1: memref<2x16xi32, #tpu.memory_space<vmem>>, %arg2: memref<56x32xf32, #tpu.memory_space<vmem>>, %arg3: memref<96x8xf32, #tpu.memory_space<vmem>>, %arg4: memref<1x8xf32, #tpu.memory_space<vmem>>, %arg5: memref<128x8xf32, #tpu.memory_space<vmem>>, %arg6: memref<1x8xf32, #tpu.memory_space<vmem>>, %arg7: memref<16x16xf32, #tpu.memory_space<vmem>>, %arg8: memref<1x16xf32, #tpu.memory_space<vmem>>, %arg9: memref<16x128xf32, #tpu.memory_space<vmem>>, %arg10: memref<1x128xf32, #tpu.memory_space<vmem>>, %arg11: memref<2x128xf32, #tpu.memory_space<vmem>>) attributes {dimension_semantics = [#tpu.dimension_semantics<arbitrary>], iteration_bounds = array<i64: 1>, scalar_prefetch = 0 : i64, scratch_operands = 0 : i64, tpu.core_type = #tpu.core_type<tc>, window_params = [{pipeline_mode = #tpu.pipeline_mode<synchronous>, transform_indices = @transform_0, window_bounds = array<i64: 2, 16>}, {pipeline_mode = #tpu.pipeline_mode<synchronous>, transform_indices = @transform_1, window_bounds = array<i64: 56, 32>}, {pipeline_mode = #tpu.pipeline_mode<synchronous>, transform_indices = @transform_2, window_bounds = array<i64: 96, 8>}, {pipeline_mode = #tpu.pipeline_mode<synchronous>, transform_indices = @transform_3, window_bounds = array<i64: 1, 8>}, {pipeline_mode = #tpu.pipeline_mode<synchronous>, transform_indices = @transform_4, window_bounds = array<i64: 128, 8>}, {pipeline_mode = #tpu.pipeline_mode<synchronous>, transform_indices = @transform_5, window_bounds = array<i64: 1, 8>}, {pipeline_mode = #tpu.pipeline_mode<synchronous>, transform_indices = @transform_6, window_bounds = array<i64: 16, 16>}, {pipeline_mode = #tpu.pipeline_mode<synchronous>, transform_indices = @transform_7, window_bounds = array<i64: 1, 16>}, {pipeline_mode = #tpu.pipeline_mode<synchronous>, transform_indices = @transform_8, window_bounds = array<i64: 16, 128>}, {pipeline_mode = #tpu.pipeline_mode<synchronous>, transform_indices = @transform_9, window_bounds = array<i64: 1, 128>}, {pipeline_mode = #tpu.pipeline_mode<synchronous>, transform_indices = @transform_10, window_bounds = array<i64: 2, 128>}]} {
    %c0 = arith.constant 0 : index
    %c0_0 = arith.constant 0 : index
    %0 = vector.load %arg1[%c0, %c0_0] : memref<2x16xi32, #tpu.memory_space<vmem>>, vector<2x16xi32>
    %1 = tpu.iota {dimensions = array<i32: 2>} : vector<2x16x56xi32>
    %2 = vector.shape_cast %0 : vector<2x16xi32> to vector<2x16x1xi32>
    %3 = vector.broadcast %2 : vector<2x16x1xi32> to vector<2x16x56xi32>
    %4 = arith.cmpi eq, %1, %3 : vector<2x16x56xi32>
    %5 = arith.extui %4 : vector<2x16x56xi1> to vector<2x16x56xi32>
    %6 = arith.sitofp %5 : vector<2x16x56xi32> to vector<2x16x56xf32>
    %c0_1 = arith.constant 0 : index
    %c0_2 = arith.constant 0 : index
    %7 = vector.load %arg2[%c0_1, %c0_2] : memref<56x32xf32, #tpu.memory_space<vmem>>, vector<56x32xf32>
    "tpu.trace_start"() <{level = 10 : i32, message = "btv,ve->bte"}> : () -> ()
    %cst = arith.constant dense<0.000000e+00> : vector<2x16x32xf32>
    %8 = tpu.matmul %6, %7, %cst {dimension_numbers = #tpu.dot_dimension_numbers<[2], [0], [0, 1], [1], [0, 0, 0, 1, 1, 1], [], []>} : vector<2x16x56xf32>, vector<56x32xf32>, vector<2x16x32xf32> -> vector<2x16x32xf32>
    "tpu.trace_stop"() : () -> ()
    %9 = vector.extract_strided_slice %8 {offsets = [0, 0, 0], sizes = [2, 14, 32], strides = [1, 1, 1]} : vector<2x16x32xf32> to vector<2x14x32xf32>
    %10 = vector.extract_strided_slice %8 {offsets = [0, 1, 0], sizes = [2, 14, 32], strides = [1, 1, 1]} : vector<2x16x32xf32> to vector<2x14x32xf32>
    %11 = vector.extract_strided_slice %8 {offsets = [0, 2, 0], sizes = [2, 14, 32], strides = [1, 1, 1]} : vector<2x16x32xf32> to vector<2x14x32xf32>
    %12 = tpu.concatenate %9, %10, %11 in 2 : vector<2x14x32xf32>, vector<2x14x32xf32>, vector<2x14x32xf32> -> vector<2x14x96xf32>
    %c0_3 = arith.constant 0 : index
    %c0_4 = arith.constant 0 : index
    %13 = vector.load %arg3[%c0_3, %c0_4] : memref<96x8xf32, #tpu.memory_space<vmem>>, vector<96x8xf32>
    "tpu.trace_start"() <{level = 10 : i32, message = "btk,kf->btf"}> : () -> ()
    %cst_5 = arith.constant dense<0.000000e+00> : vector<2x14x8xf32>
    %14 = tpu.matmul %12, %13, %cst_5 {dimension_numbers = #tpu.dot_dimension_numbers<[2], [0], [0, 1], [1], [0, 0, 0, 1, 1, 1], [], []>} : vector<2x14x96xf32>, vector<96x8xf32>, vector<2x14x8xf32> -> vector<2x14x8xf32>
    "tpu.trace_stop"() : () -> ()
    %c0_6 = arith.constant 0 : index
    %c0_7 = arith.constant 0 : index
    %15 = vector.load %arg4[%c0_6, %c0_7] : memref<1x8xf32, #tpu.memory_space<vmem>>, vector<1x8xf32>
    %16 = vector.shape_cast %15 : vector<1x8xf32> to vector<1x1x8xf32>
    %17 = vector.broadcast %16 : vector<1x1x8xf32> to vector<2x14x8xf32>
    %18 = arith.addf %14, %17 : vector<2x14x8xf32>
    %cst_8 = arith.constant 0.000000e+00 : f32
    %19 = vector.broadcast %cst_8 : f32 to vector<2x14x8xf32>
    %20 = arith.cmpf ogt, %18, %19 : vector<2x14x8xf32>
    %cst_9 = arith.constant 0.000000e+00 : f32
    %21 = vector.broadcast %cst_9 : f32 to vector<2x14x8xf32>
    %22 = arith.minimumf %18, %21 : vector<2x14x8xf32>
    %23 = math.exp %22 : vector<2x14x8xf32>
    %cst_10 = arith.constant 1.000000e+00 : f32
    %24 = vector.broadcast %cst_10 : f32 to vector<2x14x8xf32>
    %25 = arith.subf %23, %24 : vector<2x14x8xf32>
    %26 = arith.select %20, %18, %25 : vector<2x14x8xi1>, vector<2x14x8xf32>
    %cst_11 = arith.constant dense<0xFF800000> : vector<2x8xf32>
    %27 = vector.multi_reduction <maximumf>, %26, %cst_11 [1] : vector<2x14x8xf32> to vector<2x8xf32>
    %28 = vector.extract_strided_slice %8 {offsets = [0, 0, 0], sizes = [2, 13, 32], strides = [1, 1, 1]} : vector<2x16x32xf32> to vector<2x13x32xf32>
    %29 = vector.extract_strided_slice %8 {offsets = [0, 1, 0], sizes = [2, 13, 32], strides = [1, 1, 1]} : vector<2x16x32xf32> to vector<2x13x32xf32>
    %30 = vector.extract_strided_slice %8 {offsets = [0, 2, 0], sizes = [2, 13, 32], strides = [1, 1, 1]} : vector<2x16x32xf32> to vector<2x13x32xf32>
    %31 = vector.extract_strided_slice %8 {offsets = [0, 3, 0], sizes = [2, 13, 32], strides = [1, 1, 1]} : vector<2x16x32xf32> to vector<2x13x32xf32>
    %32 = tpu.concatenate %28, %29, %30, %31 in 2 : vector<2x13x32xf32>, vector<2x13x32xf32>, vector<2x13x32xf32>, vector<2x13x32xf32> -> vector<2x13x128xf32>
    %c0_12 = arith.constant 0 : index
    %c0_13 = arith.constant 0 : index
    %33 = vector.load %arg5[%c0_12, %c0_13] : memref<128x8xf32, #tpu.memory_space<vmem>>, vector<128x8xf32>
    "tpu.trace_start"() <{level = 10 : i32, message = "btk,kf->btf"}> : () -> ()
    %cst_14 = arith.constant dense<0.000000e+00> : vector<2x13x8xf32>
    %34 = tpu.matmul %32, %33, %cst_14 {dimension_numbers = #tpu.dot_dimension_numbers<[2], [0], [0, 1], [1], [0, 0, 0, 1, 1, 1], [], []>} : vector<2x13x128xf32>, vector<128x8xf32>, vector<2x13x8xf32> -> vector<2x13x8xf32>
    "tpu.trace_stop"() : () -> ()
    %c0_15 = arith.constant 0 : index
    %c0_16 = arith.constant 0 : index
    %35 = vector.load %arg6[%c0_15, %c0_16] : memref<1x8xf32, #tpu.memory_space<vmem>>, vector<1x8xf32>
    %36 = vector.shape_cast %35 : vector<1x8xf32> to vector<1x1x8xf32>
    %37 = vector.broadcast %36 : vector<1x1x8xf32> to vector<2x13x8xf32>
    %38 = arith.addf %34, %37 : vector<2x13x8xf32>
    %cst_17 = arith.constant 0.000000e+00 : f32
    %39 = vector.broadcast %cst_17 : f32 to vector<2x13x8xf32>
    %40 = arith.cmpf ogt, %38, %39 : vector<2x13x8xf32>
    %cst_18 = arith.constant 0.000000e+00 : f32
    %41 = vector.broadcast %cst_18 : f32 to vector<2x13x8xf32>
    %42 = arith.minimumf %38, %41 : vector<2x13x8xf32>
    %43 = math.exp %42 : vector<2x13x8xf32>
    %cst_19 = arith.constant 1.000000e+00 : f32
    %44 = vector.broadcast %cst_19 : f32 to vector<2x13x8xf32>
    %45 = arith.subf %43, %44 : vector<2x13x8xf32>
    %46 = arith.select %40, %38, %45 : vector<2x13x8xi1>, vector<2x13x8xf32>
    %cst_20 = arith.constant dense<0xFF800000> : vector<2x8xf32>
    %47 = vector.multi_reduction <maximumf>, %46, %cst_20 [1] : vector<2x13x8xf32> to vector<2x8xf32>
    %48 = tpu.concatenate %27, %47 in 1 : vector<2x8xf32>, vector<2x8xf32> -> vector<2x16xf32>
    %c0_21 = arith.constant 0 : index
    %c0_22 = arith.constant 0 : index
    %49 = vector.load %arg7[%c0_21, %c0_22] : memref<16x16xf32, #tpu.memory_space<vmem>>, vector<16x16xf32>
    %cst_23 = arith.constant dense<0.000000e+00> : vector<2x16xf32>
    %50 = tpu.matmul %48, %49, %cst_23 {dimension_numbers = #tpu.dot_dimension_numbers<[1], [0], [0], [1], [0, 0, 1, 1], [], []>} : vector<2x16xf32>, vector<16x16xf32>, vector<2x16xf32> -> vector<2x16xf32>
    %c0_24 = arith.constant 0 : index
    %c0_25 = arith.constant 0 : index
    %51 = vector.load %arg8[%c0_24, %c0_25] : memref<1x16xf32, #tpu.memory_space<vmem>>, vector<1x16xf32>
    %52 = vector.broadcast %51 : vector<1x16xf32> to vector<2x16xf32>
    %53 = arith.addf %50, %52 : vector<2x16xf32>
    %cst_26 = arith.constant 0.000000e+00 : f32
    %54 = vector.broadcast %cst_26 : f32 to vector<2x16xf32>
    %55 = arith.subf %54, %53 : vector<2x16xf32>
    %56 = math.exp %55 : vector<2x16xf32>
    %cst_27 = arith.constant 1.000000e+00 : f32
    %57 = vector.broadcast %cst_27 : f32 to vector<2x16xf32>
    %58 = arith.addf %57, %56 : vector<2x16xf32>
    %59 = tpu.reciprocal %58 {approx = true} : vector<2x16xf32> -> vector<2x16xf32>
    %cst_28 = arith.constant 0.000000e+00 : f32
    %60 = vector.broadcast %cst_28 : f32 to vector<2x16xf32>
    %61 = arith.cmpf ogt, %53, %60 : vector<2x16xf32>
    %cst_29 = arith.constant 0.000000e+00 : f32
    %62 = vector.broadcast %cst_29 : f32 to vector<2x16xf32>
    %63 = arith.minimumf %53, %62 : vector<2x16xf32>
    %64 = math.exp %63 : vector<2x16xf32>
    %cst_30 = arith.constant 1.000000e+00 : f32
    %65 = vector.broadcast %cst_30 : f32 to vector<2x16xf32>
    %66 = arith.subf %64, %65 : vector<2x16xf32>
    %67 = arith.select %61, %53, %66 : vector<2x16xi1>, vector<2x16xf32>
    %68 = arith.mulf %59, %67 : vector<2x16xf32>
    %cst_31 = arith.constant 1.000000e+00 : f32
    %69 = vector.broadcast %cst_31 : f32 to vector<2x16xf32>
    %70 = arith.subf %69, %59 : vector<2x16xf32>
    %71 = arith.mulf %70, %48 : vector<2x16xf32>
    %72 = arith.addf %68, %71 : vector<2x16xf32>
    %c0_32 = arith.constant 0 : index
    %c0_33 = arith.constant 0 : index
    %73 = vector.load %arg9[%c0_32, %c0_33] : memref<16x128xf32, #tpu.memory_space<vmem>>, vector<16x128xf32>
    %cst_34 = arith.constant dense<0.000000e+00> : vector<2x128xf32>
    %74 = tpu.matmul %72, %73, %cst_34 {dimension_numbers = #tpu.dot_dimension_numbers<[1], [0], [0], [1], [0, 0, 1, 1], [], []>} : vector<2x16xf32>, vector<16x128xf32>, vector<2x128xf32> -> vector<2x128xf32>
    %c0_35 = arith.constant 0 : index
    %c0_36 = arith.constant 0 : index
    %75 = vector.load %arg10[%c0_35, %c0_36] : memref<1x128xf32, #tpu.memory_space<vmem>>, vector<1x128xf32>
    %76 = vector.broadcast %75 : vector<1x128xf32> to vector<2x128xf32>
    %77 = arith.addf %74, %76 : vector<2x128xf32>
    %c0_37 = arith.constant 0 : index
    %c0_38 = arith.constant 0 : index
    %78 = vector.load %arg11[%c0_37, %c0_38] : memref<2x128xf32, #tpu.memory_space<vmem>>, vector<2x128xf32>
    tpu.vector_store %arg11[%c0_37, %c0_38], %77 {strides = array<i32>} : memref<2x128xf32, #tpu.memory_space<vmem>>, vector<2x128xf32>,
    return
  }
  func.func @transform_0(%arg0: i32) -> (i32, i32) {
    %c0_i32 = arith.constant 0 : i32
    %c0_i32_0 = arith.constant 0 : i32
    %c0_i32_1 = arith.constant 0 : i32
    return %c0_i32, %c0_i32_0 : i32, i32
  }
  func.func @transform_1(%arg0: i32) -> (i32, i32) {
    %c0_i32 = arith.constant 0 : i32
    %c0_i32_0 = arith.constant 0 : i32
    %c0_i32_1 = arith.constant 0 : i32
    return %c0_i32, %c0_i32_0 : i32, i32
  }
  func.func @transform_2(%arg0: i32) -> (i32, i32) {
    %c0_i32 = arith.constant 0 : i32
    %c0_i32_0 = arith.constant 0 : i32
    %c0_i32_1 = arith.constant 0 : i32
    return %c0_i32, %c0_i32_0 : i32, i32
  }
  func.func @transform_3(%arg0: i32) -> (i32, i32) {
    %c0_i32 = arith.constant 0 : i32
    %c0_i32_0 = arith.constant 0 : i32
    %c0_i32_1 = arith.constant 0 : i32
    return %c0_i32, %c0_i32_0 : i32, i32
  }
  func.func @transform_4(%arg0: i32) -> (i32, i32) {
    %c0_i32 = arith.constant 0 : i32
    %c0_i32_0 = arith.constant 0 : i32
    %c0_i32_1 = arith.constant 0 : i32
    return %c0_i32, %c0_i32_0 : i32, i32
  }
  func.func @transform_5(%arg0: i32) -> (i32, i32) {
    %c0_i32 = arith.constant 0 : i32
    %c0_i32_0 = arith.constant 0 : i32
    %c0_i32_1 = arith.constant 0 : i32
    return %c0_i32, %c0_i32_0 : i32, i32
  }
  func.func @transform_6(%arg0: i32) -> (i32, i32) {
    %c0_i32 = arith.constant 0 : i32
    %c0_i32_0 = arith.constant 0 : i32
    %c0_i32_1 = arith.constant 0 : i32
    return %c0_i32, %c0_i32_0 : i32, i32
  }
  func.func @transform_7(%arg0: i32) -> (i32, i32) {
    %c0_i32 = arith.constant 0 : i32
    %c0_i32_0 = arith.constant 0 : i32
    %c0_i32_1 = arith.constant 0 : i32
    return %c0_i32, %c0_i32_0 : i32, i32
  }
  func.func @transform_8(%arg0: i32) -> (i32, i32) {
    %c0_i32 = arith.constant 0 : i32
    %c0_i32_0 = arith.constant 0 : i32
    %c0_i32_1 = arith.constant 0 : i32
    return %c0_i32, %c0_i32_0 : i32, i32
  }
  func.func @transform_9(%arg0: i32) -> (i32, i32) {
    %c0_i32 = arith.constant 0 : i32
    %c0_i32_0 = arith.constant 0 : i32
    %c0_i32_1 = arith.constant 0 : i32
    return %c0_i32, %c0_i32_0 : i32, i32
  }
  func.func @transform_10(%arg0: i32) -> (i32, i32) {
    %c0_i32 = arith.constant 0 : i32
    %c0_i32_0 = arith.constant 0 : i32
    %c0_i32_1 = arith.constant 0 : i32
    return %c0_i32, %c0_i32_0 : i32, i32
  }
}

</mosaic_0001>

<llo_original>
// kernel: tpu_custom_call.1
$region0: #{tpu_custom_call.1}
  #allocation0 [shape = 'u32[]', space=smem, size = 0x4, offset = 0x4, fixed_abs, tag = 'smem constant byte address 0x4 - core index']
  #allocation1 [shape = 'u32[144,128]{1,0:T(1,128)}', space=vmem, size = 0x12000, scoped, tag = 'internal scratch']
  %s0 = inlined_call_operand.vmem [shape: s32[2,16], index: 0, kind: input, shape index: {}]
  %s1 = inlined_call_operand.vmem [shape: f32[56,32], index: 1, kind: input, shape index: {}]
  %s2 = inlined_call_operand.vmem [shape: f32[96,8], index: 2, kind: input, shape index: {}]
  %s3 = inlined_call_operand.vmem [shape: f32[1,8], index: 3, kind: input, shape index: {}]
  %s4 = inlined_call_operand.vmem [shape: f32[128,8], index: 4, kind: input, shape index: {}]
  %s5 = inlined_call_operand.vmem [shape: f32[1,8], index: 5, kind: input, shape index: {}]
  %s6 = inlined_call_operand.vmem [shape: f32[16,16], index: 6, kind: input, shape index: {}]
  %s7 = inlined_call_operand.vmem [shape: f32[1,16], index: 7, kind: input, shape index: {}]
  %s8 = inlined_call_operand.vmem [shape: f32[16,128], index: 8, kind: input, shape index: {}]
  %s9 = inlined_call_operand.vmem [shape: f32[1,128], index: 9, kind: input, shape index: {}]
  %s10 = inlined_call_operand.hbm [shape: f32[2,128], index: 10, kind: output, shape index: {}]
  %s11 = sld [smem:[#allocation0]]
  $region50: #{tpu_custom_call.1} parent=0
    _
  %s13 = ssub.s32 1, %s11
  %s14 = scalar_select 0, %s13, %s11
  $region1: #{tpu_custom_call.1} parent=0
    #allocation2 [shape = 'u8[1024]{0}', space=vmem, size = 0x400, scoped, tag = 'output window, operand 0, single buffered']
    #allocation3 [shape = 's32[1]{0}', space=sflag, size = 0x4, scoped, tag = 'scoped memory for tpu_custom_call.1']
    %15 = vsyncpa [#allocation3], 0
    // Predicated region
    $region2: #{tpu_custom_call.1} parent=1 // pred_check
      _
    $region3: #{tpu_custom_call.1} parent=1 // pred_check_branch
      %17 = sbr.rel (0) target = $region5
    $region4: #{tpu_custom_call.1} parent=1 // pred_region
      _
    $region5: #{tpu_custom_call.1} parent=1 // pred_fallthru
      _
    // Predicated region
    $region6: #{tpu_custom_call.1} parent=1 // pred_check
      _
    $region7: #{tpu_custom_call.1} parent=1 // pred_check_branch
      %19 = sbr.rel (0) target = $region9
    $region8: #{tpu_custom_call.1} parent=1 // pred_region
      _
    $region9: #{tpu_custom_call.1} parent=1 // pred_fallthru
      _
    // Predicated region
    $region10: #{tpu_custom_call.1} parent=1 // pred_check
      _
    $region11: #{tpu_custom_call.1} parent=1 // pred_check_branch
      %21 = sbr.rel (0) target = $region13
    $region12: #{tpu_custom_call.1} parent=1 // pred_region
      _
    $region13: #{tpu_custom_call.1} parent=1 // pred_fallthru
      _
    // Predicated region
    $region14: #{tpu_custom_call.1} parent=1 // pred_check
      _
    $region15: #{tpu_custom_call.1} parent=1 // pred_check_branch
      %23 = sbr.rel (0) target = $region17
    $region16: #{tpu_custom_call.1} parent=1 // pred_region
      _
    $region17: #{tpu_custom_call.1} parent=1 // pred_fallthru
      _
    // Predicated region
    $region18: #{tpu_custom_call.1} parent=1 // pred_check
      _
    $region19: #{tpu_custom_call.1} parent=1 // pred_check_branch
      %25 = sbr.rel (0) target = $region21
    $region20: #{tpu_custom_call.1} parent=1 // pred_region
      _
    $region21: #{tpu_custom_call.1} parent=1 // pred_fallthru
      _
    // Predicated region
    $region22: #{tpu_custom_call.1} parent=1 // pred_check
      _
    $region23: #{tpu_custom_call.1} parent=1 // pred_check_branch
      %27 = sbr.rel (0) target = $region25
    $region24: #{tpu_custom_call.1} parent=1 // pred_region
      _
    $region25: #{tpu_custom_call.1} parent=1 // pred_fallthru
      _
    // Predicated region
    $region26: #{tpu_custom_call.1} parent=1 // pred_check
      _
    $region27: #{tpu_custom_call.1} parent=1 // pred_check_branch
      %29 = sbr.rel (0) target = $region29
    $region28: #{tpu_custom_call.1} parent=1 // pred_region
      _
    $region29: #{tpu_custom_call.1} parent=1 // pred_fallthru
      _
    // Predicated region
    $region30: #{tpu_custom_call.1} parent=1 // pred_check
      _
    $region31: #{tpu_custom_call.1} parent=1 // pred_check_branch
      %31 = sbr.rel (0) target = $region33
    $region32: #{tpu_custom_call.1} parent=1 // pred_region
      _
    $region33: #{tpu_custom_call.1} parent=1 // pred_fallthru
      _
    // Predicated region
    $region34: #{tpu_custom_call.1} parent=1 // pred_check
      _
    $region35: #{tpu_custom_call.1} parent=1 // pred_check_branch
      %33 = sbr.rel (0) target = $region37
    $region36: #{tpu_custom_call.1} parent=1 // pred_region
      _
    $region37: #{tpu_custom_call.1} parent=1 // pred_fallthru
      _
    // Predicated region
    $region38: #{tpu_custom_call.1} parent=1 // pred_check
      _
    $region39: #{tpu_custom_call.1} parent=1 // pred_check_branch
      %35 = sbr.rel (0) target = $region41
    $region40: #{tpu_custom_call.1} parent=1 // pred_region
      _
    $region41: #{tpu_custom_call.1} parent=1 // pred_fallthru
      _
    %v36 = vld [vmem:[%s0] sm:$0x3]
    %v37 = vlaneseq
    %v38 = vand.u32 %v37, 127
    %v39 = vlaneseq
    %v40 = vshrl.u32 %v39, 7
    %v41 = vsub.s32 0, %v40
    %v42 = vrot.slane %v36, %v41
    %44 = vbcast.lane.b32.xlu0 %v42, 256
    %v45 = vpop.permute.xlu0 %44
    %s47 = sor.u32 256, 8
    %48 = vbcast.lane.b32.xlu0 %v42, %s47
    %v49 = vpop.permute.xlu0 %48
    %v50 = vlaneseq
    %v51 = vshrl.u32 %v50, 7
    %v52 = vsub.s32 1, %v51
    %v53 = vrot.slane %v36, %v52
    %55 = vbcast.lane.b32.xlu0 %v53, 256
    %v56 = vpop.permute.xlu0 %55
    %s58 = sor.u32 256, 8
    %59 = vbcast.lane.b32.xlu0 %v53, %s58
    %v60 = vpop.permute.xlu0 %59
    %vm61 = vcmp.eq.s32.totalorder %v38, %v45
    %vm62 = vcmp.eq.s32.totalorder %v38, %v49
    %vm63 = vcmp.eq.s32.totalorder %v38, %v56
    %vm64 = vcmp.eq.s32.totalorder %v38, %v60
    %v65 = vsel %vm61, 1, 0
    %v66 = vsel %vm62, 1, 0
    %v67 = vsel %vm63, 1, 0
    %v68 = vsel %vm64, 1, 0
    %v69 = vcvt.s32.f32 %v65
    %v70 = vcvt.s32.f32 %v66
    %v71 = vcvt.s32.f32 %v67
    %v72 = vcvt.s32.f32 %v68
    %v73 = vld [vmem:[%s1] sm:$0xff]
    %v74 = vld [vmem:[%s1 + $0x8] sm:$0xff]
    %v75 = vld [vmem:[%s1 + $0x10] sm:$0xff]
    %v76 = vld [vmem:[%s1 + $0x18] sm:$0xff]
    %v77 = vld [vmem:[%s1 + $0x20] sm:$0xff]
    %v78 = vld [vmem:[%s1 + $0x28] sm:$0xff]
    %v79 = vld [vmem:[%s1 + $0x30] sm:$0xff]
    %vm80 = vcmask 457728
    %v82 = vsel %vm80, %v69, 0
    %v85 = vsel %vm80, %v70, 0
    %v88 = vsel %vm80, %v71, 0
    %v91 = vsel %vm80, %v72, 0
    %93 = vmatprep.subr.mxu0 0.0
    %94 = vmatpush1.msra.mxu0 0.0
    %95 = vmatprep.subr.mxu0 0.0
    %96 = vmatpush1.msra.mxu0 0.0
    %97 = vmatprep.subr.mxu0 0.0
    %98 = vmatpush1.msra.mxu0 0.0
    %99 = vmatprep.subr.mxu0 0.0
    %100 = vmatpush1.msra.mxu0 0.0
    %101 = vmatprep.subr.mxu0 0.0
    %102 = vmatpush1.msra.mxu0 0.0
    %103 = vmatprep.subr.mxu0 0.0
    %104 = vmatpush1.msra.mxu0 0.0
    %105 = vmatprep.subr.mxu0 0.0
    %106 = vmatpush1.msra.mxu0 0.0
    %107 = vmatprep.subr.mxu0 0.0
    %108 = vmatpush1.msra.mxu0 0.0
    %109 = vmatprep.subr.mxu0 0.0
    %110 = vmatpush1.msra.mxu0 0.0
    %111 = vmatprep.subr.mxu0 0.0
    %112 = vmatpush1.msra.mxu0 %v79
    %113 = vmatprep.subr.mxu0 0.0
    %114 = vmatpush1.msra.mxu0 %v78
    %115 = vmatprep.subr.mxu0 0.0
    %116 = vmatpush1.msra.mxu0 %v77
    %117 = vmatprep.subr.mxu0 0.0
    %118 = vmatpush1.msra.mxu0 %v76
    %119 = vmatprep.subr.mxu0 0.0
    %120 = vmatpush1.msra.mxu0 %v75
    %121 = vmatprep.subr.mxu0 0.0
    %122 = vmatpush1.msra.mxu0 %v74
    %123 = vmatprep.subr.mxu0 0.0
    %124 = vmatpush1.msra.mxu0 %v73
    %125 = vmatprep.subr.mxu0 0.0
    %126 = vmatpush2.msra.mxu0 0.0
    %127 = vmatprep.subr.mxu0 0.0
    %128 = vmatpush2.msra.mxu0 0.0
    %129 = vmatprep.subr.mxu0 0.0
    %130 = vmatpush2.msra.mxu0 0.0
    %131 = vmatprep.subr.mxu0 0.0
    %132 = vmatpush2.msra.mxu0 0.0
    %133 = vmatprep.subr.mxu0 0.0
    %134 = vmatpush2.msra.mxu0 0.0
    %135 = vmatprep.subr.mxu0 0.0
    %136 = vmatpush2.msra.mxu0 0.0
    %137 = vmatprep.subr.mxu0 0.0
    %138 = vmatpush2.msra.mxu0 0.0
    %139 = vmatprep.subr.mxu0 0.0
    %140 = vmatpush2.msra.mxu0 0.0
    %141 = vmatprep.subr.mxu0 0.0
    %142 = vmatpush2.msra.mxu0 0.0
    %143 = vmatprep.subr.mxu0 0.0
    %144 = vmatpush2.msra.mxu0 0.0
    %145 = vmatprep.subr.mxu0 0.0
    %146 = vmatpush2.msra.mxu0 0.0
    %147 = vmatprep.subr.mxu0 0.0
    %148 = vmatpush2.msra.mxu0 0.0
    %149 = vmatprep.subr.mxu0 0.0
    %150 = vmatpush2.msra.mxu0 0.0
    %151 = vmatprep.subr.mxu0 0.0
    %152 = vmatpush2.msra.mxu0 0.0
    %153 = vmatprep.subr.mxu0 0.0
    %154 = vmatpush2.msra.mxu0 0.0
    %155 = vmatprep.subr.mxu0 0.0
    %156 = vmatpush2.msra.mxu0 0.0
    %157 = vmatprep.mubr.f32.mxu0 0.0
    %158 = vmatmul.mubr.f32.gmra.mxu0 %v82
    %v159 = vpop.f32.mrf.mxu0
    %v160 = vadd.f32 0.0, %v159
    %v161 = vpop.f32.mrf.mxu0
    %162 = vmatprep.mubr.f32.mxu0 0.0
    %163 = vmatmul.mubr.f32.gmra.mxu0 %v85
    %v164 = vpop.f32.mrf.mxu0
    %v165 = vadd.f32 0.0, %v164
    %v166 = vpop.f32.mrf.mxu0
    %167 = vmatprep.mubr.f32.mxu0 0.0
    %168 = vmatmul.mubr.f32.gmra.mxu0 %v88
    %v169 = vpop.f32.mrf.mxu0
    %v170 = vadd.f32 0.0, %v169
    %v171 = vpop.f32.mrf.mxu0
    %172 = vmatprep.mubr.f32.mxu0 0.0
    %173 = vmatmul.mubr.f32.gmra.mxu0 %v91
    %v174 = vpop.f32.mrf.mxu0
    %v175 = vadd.f32 0.0, %v174
    %v176 = vpop.f32.mrf.mxu0
    %177 = vdwg.mxu0
    %vm182 = vcmask 1046528
    %v183 = vrot.slane %v160, 1
    %v184 = vrot.slane %v165, 1
    %v185 = vsel %vm182, %v183, %v184
    %v186 = vrot.slane %v170, 1
    %v187 = vrot.slane %v175, 1
    %v188 = vsel %vm182, %v186, %v187
    %189 = vrot.lane.b32.xlu0 %v185, 32
    %v190 = vpop.permute.xlu0 %189
    %191 = vrot.lane.b32.xlu0 %v184, 32
    %v192 = vpop.permute.xlu0 %191
    %193 = vrot.lane.b32.xlu0 %v188, 32
    %v194 = vpop.permute.xlu0 %193
    %195 = vrot.lane.b32.xlu0 %v187, 32
    %v196 = vpop.permute.xlu0 %195
    %vm201 = vcmask 1045504
    %v202 = vrot.slane %v160, 2
    %v203 = vrot.slane %v165, 2
    %v204 = vsel %vm201, %v202, %v203
    %v205 = vrot.slane %v170, 2
    %v206 = vrot.slane %v175, 2
    %v207 = vsel %vm201, %v205, %v206
    %208 = vrot.lane.b32.xlu0 %v204, 64
    %v209 = vpop.permute.xlu0 %208
    %210 = vrot.lane.b32.xlu0 %v203, 64
    %v211 = vpop.permute.xlu0 %210
    %212 = vrot.lane.b32.xlu0 %v207, 64
    %v213 = vpop.permute.xlu0 %212
    %214 = vrot.lane.b32.xlu0 %v206, 64
    %v215 = vpop.permute.xlu0 %214
    %vm220 = vcmask 261120
    %v221 = vsel %vm220, %v160, %v190
    %v222 = vsel %vm220, %v165, %v192
    %v223 = vsel %vm220, %v170, %v194
    %v224 = vsel %vm220, %v175, %v196
    %vm225 = vcmask 523264
    %v226 = vsel %vm225, %v221, %v209
    %v227 = vsel %vm225, %v222, %v211
    %v228 = vsel %vm225, %v223, %v213
    %v229 = vsel %vm225, %v224, %v215
    %v230 = vld [vmem:[%s2] sm:$0xff]
    %v231 = vld [vmem:[%s2 + $0x8] sm:$0xff]
    %v232 = vld [vmem:[%s2 + $0x10] sm:$0xff]
    %v233 = vld [vmem:[%s2 + $0x18] sm:$0xff]
    %v234 = vld [vmem:[%s2 + $0x20] sm:$0xff]
    %v235 = vld [vmem:[%s2 + $0x28] sm:$0xff]
    %v236 = vld [vmem:[%s2 + $0x30] sm:$0xff]
    %v237 = vld [vmem:[%s2 + $0x38] sm:$0xff]
    %v238 = vld [vmem:[%s2 + $0x40] sm:$0xff]
    %v239 = vld [vmem:[%s2 + $0x48] sm:$0xff]
    %v240 = vld [vmem:[%s2 + $0x50] sm:$0xff]
    %v241 = vld [vmem:[%s2 + $0x58] sm:$0xff]
    %v242 = vld [vmem:[%s3] sm:$0x1]
    %v244 = vlaneseq
    %v245 = vshrl.u32 %v244, 7
    %v246 = vsub.s32 0, %v245
    %v247 = vrot.slane %v242, %v246
    %v252 = vcombine.high %v226, %v226
    %v254 = vunpack.c.l.s4 1983009808
    %v255 = vunpack.c.0.s8 %v254
    %v256 = vlaneseq
    %v257 = vshrl.u32 %v256, 7
    %v258 = vsub.s32 %v255, %v257
    %v259 = vrot.slane %v226, %v258
    %v261 = vunpack.c.l.s4 1983009808
    %v262 = vunpack.c.0.s8 %v261
    %v263 = vlaneseq
    %v264 = vshrl.u32 %v263, 7
    %v265 = vsub.s32 %v262, %v264
    %v266 = vrot.slane %v252, %v265
    %v267 = vcombine.high %v259, %v259
    %v268 = vcombine.high %v266, %v266
    %v269 = vcombine.high %v227, %v227
    %v271 = vunpack.c.l.s4 1983009808
    %v272 = vunpack.c.0.s8 %v271
    %v273 = vlaneseq
    %v274 = vshrl.u32 %v273, 7
    %v275 = vsub.s32 %v272, %v274
    %v276 = vrot.slane %v227, %v275
    %v278 = vunpack.c.l.s4 1983009808
    %v279 = vunpack.c.0.s8 %v278
    %v280 = vlaneseq
    %v281 = vshrl.u32 %v280, 7
    %v282 = vsub.s32 %v279, %v281
    %v283 = vrot.slane %v269, %v282
    %v284 = vcombine.high %v276, %v276
    %v285 = vcombine.high %v228, %v228
    %v287 = vunpack.c.l.s4 1983009808
    %v288 = vunpack.c.0.s8 %v287
    %v289 = vlaneseq
    %v290 = vshrl.u32 %v289, 7
    %v291 = vsub.s32 %v288, %v290
    %v292 = vrot.slane %v228, %v291
    %v294 = vunpack.c.l.s4 1983009808
    %v295 = vunpack.c.0.s8 %v294
    %v296 = vlaneseq
    %v297 = vshrl.u32 %v296, 7
    %v298 = vsub.s32 %v295, %v297
    %v299 = vrot.slane %v285, %v298
    %v300 = vcombine.high %v292, %v292
    %v301 = vcombine.high %v299, %v299
    %v302 = vcombine.high %v229, %v229
    %v304 = vunpack.c.l.s4 1983009808
    %v305 = vunpack.c.0.s8 %v304
    %v306 = vlaneseq
    %v307 = vshrl.u32 %v306, 7
    %v308 = vsub.s32 %v305, %v307
    %v309 = vrot.slane %v229, %v308
    %v311 = vunpack.c.l.s4 1983009808
    %v312 = vunpack.c.0.s8 %v311
    %v313 = vlaneseq
    %v314 = vshrl.u32 %v313, 7
    %v315 = vsub.s32 %v312, %v314
    %v316 = vrot.slane %v302, %v315
    %v317 = vcombine.high %v309, %v309
    %v318 = vcombine.high %v247, %v247
    %v320 = vunpack.c.l.s4 1983009808
    %v321 = vunpack.c.0.s8 %v320
    %v322 = vlaneseq
    %v323 = vshrl.u32 %v322, 7
    %v324 = vsub.s32 %v321, %v323
    %v325 = vrot.slane %v247, %v324
    %v327 = vunpack.c.l.s4 1983009808
    %v328 = vunpack.c.0.s8 %v327
    %v329 = vlaneseq
    %v330 = vshrl.u32 %v329, 7
    %v331 = vsub.s32 %v328, %v330
    %v332 = vrot.slane %v318, %v331
    %v333 = vcombine.high %v325, %v325
    %v334 = vcombine.high %v332, %v332
    %v335 = vcombine.low %v259, %v267
    %v336 = vcombine.low %v266, %v268
    %v338 = vunpack.c.l.s4 1983009808
    %v339 = vunpack.c.0.s8 %v338
    %v340 = vlaneseq
    %v341 = vshrl.u32 %v340, 7
    %v342 = vsub.s32 %v339, %v341
    %v343 = vrot.slane %v335, %v342
    %v345 = vunpack.c.l.s4 1983009808
    %v346 = vunpack.c.0.s8 %v345
    %v347 = vlaneseq
    %v348 = vshrl.u32 %v347, 7
    %v349 = vsub.s32 %v346, %v348
    %v350 = vrot.slane %v336, %v349
    %v351 = vcombine.low %v343, %v350
    %v352 = vcombine.low %v276, %v284
    %v353 = vcombine.low %v283, %v292
    %v355 = vunpack.c.l.s4 1983009808
    %v356 = vunpack.c.0.s8 %v355
    %v357 = vlaneseq
    %v358 = vshrl.u32 %v357, 7
    %v359 = vsub.s32 %v356, %v358
    %v360 = vrot.slane %v352, %v359
    %v362 = vunpack.c.l.s4 1983009808
    %v363 = vunpack.c.0.s8 %v362
    %v364 = vlaneseq
    %v365 = vshrl.u32 %v364, 7
    %v366 = vsub.s32 %v363, %v365
    %v367 = vrot.slane %v353, %v366
    %v368 = vcombine.low %v360, %v367
    %v369 = vcombine.low %v300, %v299
    %v370 = vcombine.low %v301, %v309
    %v372 = vunpack.c.l.s4 1983009808
    %v373 = vunpack.c.0.s8 %v372
    %v374 = vlaneseq
    %v375 = vshrl.u32 %v374, 7
    %v376 = vsub.s32 %v373, %v375
    %v377 = vrot.slane %v369, %v376
    %v379 = vunpack.c.l.s4 1983009808
    %v380 = vunpack.c.0.s8 %v379
    %v381 = vlaneseq
    %v382 = vshrl.u32 %v381, 7
    %v383 = vsub.s32 %v380, %v382
    %v384 = vrot.slane %v370, %v383
    %v385 = vcombine.low %v377, %v384
    %v386 = vcombine.low %v317, %v316
    %v388 = vunpack.c.l.s4 1983009808
    %v389 = vunpack.c.0.s8 %v388
    %v390 = vlaneseq
    %v391 = vshrl.u32 %v390, 7
    %v392 = vsub.s32 %v389, %v391
    %v393 = vrot.slane %v386, %v392
    %v394 = vcombine.low %v325, %v333
    %v395 = vcombine.low %v332, %v334
    %v397 = vunpack.c.l.s4 1983009808
    %v398 = vunpack.c.0.s8 %v397
    %v399 = vlaneseq
    %v400 = vshrl.u32 %v399, 7
    %v401 = vsub.s32 %v398, %v400
    %v402 = vrot.slane %v394, %v401
    %v404 = vunpack.c.l.s4 1983009808
    %v405 = vunpack.c.0.s8 %v404
    %v406 = vlaneseq
    %v407 = vshrl.u32 %v406, 7
    %v408 = vsub.s32 %v405, %v407
    %v409 = vrot.slane %v395, %v408
    %v410 = vcombine.low %v402, %v409
    %v411 = vcombine.low %v332, %v325
    %v413 = vunpack.c.l.s4 1983009808
    %v414 = vunpack.c.0.s8 %v413
    %v415 = vlaneseq
    %v416 = vshrl.u32 %v415, 7
    %v417 = vsub.s32 %v414, %v416
    %v418 = vrot.slane %v411, %v417
    %v419 = vcombine.low %v402, %v418
    %v420 = vcombine.low %v333, %v332
    %v421 = vcombine.low %v334, %v325
    %v423 = vunpack.c.l.s4 1983009808
    %v424 = vunpack.c.0.s8 %v423
    %v425 = vlaneseq
    %v426 = vshrl.u32 %v425, 7
    %v427 = vsub.s32 %v424, %v426
    %v428 = vrot.slane %v420, %v427
    %v430 = vunpack.c.l.s4 1983009808
    %v431 = vunpack.c.0.s8 %v430
    %v432 = vlaneseq
    %v433 = vshrl.u32 %v432, 7
    %v434 = vsub.s32 %v431, %v433
    %v435 = vrot.slane %v421, %v434
    %v436 = vcombine.low %v428, %v435
    %vm441 = vcmask 785408
    %v442 = vsel %vm441, %v351, 0
    %v444 = vsel %vm441, %v368, 0
    %v446 = vsel %vm441, %v385, 0
    %v448 = vsel %vm441, %v393, 0
    %450 = vmatprep.subr.mxu0 0.0
    %451 = vmatpush1.msra.mxu0 0.0
    %452 = vmatprep.subr.mxu0 0.0
    %453 = vmatpush1.msra.mxu0 0.0
    %454 = vmatprep.subr.mxu0 0.0
    %455 = vmatpush1.msra.mxu0 0.0
    %456 = vmatprep.subr.mxu0 0.0
    %457 = vmatpush1.msra.mxu0 0.0
    %458 = vmatprep.subr.mxu0 0.0
    %459 = vmatpush1.msra.mxu0 %v241
    %460 = vmatprep.subr.mxu0 0.0
    %461 = vmatpush1.msra.mxu0 %v240
    %462 = vmatprep.subr.mxu0 0.0
    %463 = vmatpush1.msra.mxu0 %v239
    %464 = vmatprep.subr.mxu0 0.0
    %465 = vmatpush1.msra.mxu0 %v238
    %466 = vmatprep.subr.mxu0 0.0
    %467 = vmatpush1.msra.mxu0 %v237
    %468 = vmatprep.subr.mxu0 0.0
    %469 = vmatpush1.msra.mxu0 %v236
    %470 = vmatprep.subr.mxu0 0.0
    %471 = vmatpush1.msra.mxu0 %v235
    %472 = vmatprep.subr.mxu0 0.0
    %473 = vmatpush1.msra.mxu0 %v234
    %474 = vmatprep.subr.mxu0 0.0
    %475 = vmatpush1.msra.mxu0 %v233
    %476 = vmatprep.subr.mxu0 0.0
    %477 = vmatpush1.msra.mxu0 %v232
    %478 = vmatprep.subr.mxu0 0.0
    %479 = vmatpush1.msra.mxu0 %v231
    %480 = vmatprep.subr.mxu0 0.0
    %481 = vmatpush1.msra.mxu0 %v230
    %482 = vmatprep.subr.mxu0 0.0
    %483 = vmatpush2.msra.mxu0 0.0
    %484 = vmatprep.subr.mxu0 0.0
    %485 = vmatpush2.msra.mxu0 0.0
    %486 = vmatprep.subr.mxu0 0.0
    %487 = vmatpush2.msra.mxu0 0.0
    %488 = vmatprep.subr.mxu0 0.0
    %489 = vmatpush2.msra.mxu0 0.0
    %490 = vmatprep.subr.mxu0 0.0
    %491 = vmatpush2.msra.mxu0 0.0
    %492 = vmatprep.subr.mxu0 0.0
    %493 = vmatpush2.msra.mxu0 0.0
    %494 = vmatprep.subr.mxu0 0.0
    %495 = vmatpush2.msra.mxu0 0.0
    %496 = vmatprep.subr.mxu0 0.0
    %497 = vmatpush2.msra.mxu0 0.0
    %498 = vmatprep.subr.mxu0 0.0
    %499 = vmatpush2.msra.mxu0 0.0
    %500 = vmatprep.subr.mxu0 0.0
    %501 = vmatpush2.msra.mxu0 0.0
    %502 = vmatprep.subr.mxu0 0.0
    %503 = vmatpush2.msra.mxu0 0.0
    %504 = vmatprep.subr.mxu0 0.0
    %505 = vmatpush2.msra.mxu0 0.0
    %506 = vmatprep.subr.mxu0 0.0
    %507 = vmatpush2.msra.mxu0 0.0
    %508 = vmatprep.subr.mxu0 0.0
    %509 = vmatpush2.msra.mxu0 0.0
    %510 = vmatprep.subr.mxu0 0.0
    %511 = vmatpush2.msra.mxu0 0.0
    %512 = vmatprep.subr.mxu0 0.0
    %513 = vmatpush2.msra.mxu0 0.0
    %514 = vmatprep.mubr.f32.mxu0 0.0
    %515 = vmatmul.mubr.f32.gmra.mxu0 %v442
    %v516 = vpop.f32.mrf.mxu0
    %v517 = vadd.f32 %v410, %v516
    %v518 = vpop.f32.mrf.mxu0
    %519 = vmatprep.mubr.f32.mxu0 0.0
    %520 = vmatmul.mubr.f32.gmra.mxu0 %v444
    %v521 = vpop.f32.mrf.mxu0
    %v522 = vadd.f32 %v419, %v521
    %v523 = vpop.f32.mrf.mxu0
    %524 = vmatprep.mubr.f32.mxu0 0.0
    %525 = vmatmul.mubr.f32.gmra.mxu0 %v446
    %v526 = vpop.f32.mrf.mxu0
    %v527 = vadd.f32 %v436, %v526
    %v528 = vpop.f32.mrf.mxu0
    %529 = vmatprep.mubr.f32.mxu0 0.0
    %530 = vmatmul.mubr.f32.gmra.mxu0 %v448
    %v531 = vpop.f32.mrf.mxu0
    %v532 = vadd.f32 %v428, %v531
    %v533 = vpop.f32.mrf.mxu0
    %534 = vdwg.mxu0
    %v539 = vcombine.high %v517, %v517
    %v541 = vunpack.c.l.s4 1983009808
    %v542 = vunpack.c.0.s8 %v541
    %v543 = vlaneseq
    %v544 = vshrl.u32 %v543, 7
    %v545 = vsub.s32 %v542, %v544
    %v546 = vrot.slane %v517, %v545
    %v548 = vunpack.c.l.s4 1983009808
    %v549 = vunpack.c.0.s8 %v548
    %v550 = vlaneseq
    %v551 = vshrl.u32 %v550, 7
    %v552 = vsub.s32 %v549, %v551
    %v553 = vrot.slane %v539, %v552
    %v554 = vcombine.high %v546, %v546
    %v555 = vcombine.high %v553, %v553
    %v556 = vcombine.high %v522, %v522
    %v558 = vunpack.c.l.s4 1983009808
    %v559 = vunpack.c.0.s8 %v558
    %v560 = vlaneseq
    %v561 = vshrl.u32 %v560, 7
    %v562 = vsub.s32 %v559, %v561
    %v563 = vrot.slane %v522, %v562
    %v565 = vunpack.c.l.s4 1983009808
    %v566 = vunpack.c.0.s8 %v565
    %v567 = vlaneseq
    %v568 = vshrl.u32 %v567, 7
    %v569 = vsub.s32 %v566, %v568
    %v570 = vrot.slane %v556, %v569
    %v571 = vcombine.high %v563, %v563
    %v572 = vcombine.high %v570, %v570
    %v573 = vcombine.high %v527, %v527
    %v575 = vunpack.c.l.s4 1983009808
    %v576 = vunpack.c.0.s8 %v575
    %v577 = vlaneseq
    %v578 = vshrl.u32 %v577, 7
    %v579 = vsub.s32 %v576, %v578
    %v580 = vrot.slane %v527, %v579
    %v582 = vunpack.c.l.s4 1983009808
    %v583 = vunpack.c.0.s8 %v582
    %v584 = vlaneseq
    %v585 = vshrl.u32 %v584, 7
    %v586 = vsub.s32 %v583, %v585
    %v587 = vrot.slane %v573, %v586
    %v588 = vcombine.high %v580, %v580
    %v589 = vcombine.high %v587, %v587
    %v591 = vunpack.c.l.s4 1983009808
    %v592 = vunpack.c.0.s8 %v591
    %v593 = vlaneseq
    %v594 = vshrl.u32 %v593, 7
    %v595 = vsub.s32 %v592, %v594
    %v596 = vrot.slane %v532, %v595
    %v597 = vcombine.high %v596, %v596
    %vm612 = vcmp.gt.f32.partialorder %v546, 0.0
    %vm613 = vcmp.gt.f32.partialorder %v554, 0.0
    %vm614 = vcmp.gt.f32.partialorder %v553, 0.0
    %vm615 = vcmp.gt.f32.partialorder %v555, 0.0
    %vm616 = vcmp.gt.f32.partialorder %v563, 0.0
    %vm617 = vcmp.gt.f32.partialorder %v571, 0.0
    %vm618 = vcmp.gt.f32.partialorder %v570, 0.0
    %vm619 = vcmp.gt.f32.partialorder %v572, 0.0
    %vm620 = vcmp.gt.f32.partialorder %v580, 0.0
    %vm621 = vcmp.gt.f32.partialorder %v588, 0.0
    %vm622 = vcmp.gt.f32.partialorder %v587, 0.0
    %vm623 = vcmp.gt.f32.partialorder %v589, 0.0
    %vm624 = vcmp.gt.f32.partialorder %v596, 0.0
    %vm625 = vcmp.gt.f32.partialorder %v597, 0.0
    %v626 = vmin.f32 %v546, 0.0
    %v627 = vmin.f32 %v554, 0.0
    %v628 = vmin.f32 %v553, 0.0
    %v629 = vmin.f32 %v555, 0.0
    %v630 = vmin.f32 %v563, 0.0
    %v631 = vmin.f32 %v571, 0.0
    %v632 = vmin.f32 %v570, 0.0
    %v633 = vmin.f32 %v572, 0.0
    %v634 = vmin.f32 %v580, 0.0
    %v635 = vmin.f32 %v588, 0.0
    %v636 = vmin.f32 %v587, 0.0
    %v637 = vmin.f32 %v589, 0.0
    %v638 = vmin.f32 %v596, 0.0
    %v639 = vmin.f32 %v597, 0.0
    %v640 = vmul.f32 %v626, 1.442695
    %v641 = vpow.pop %v640
    %v642 = vmul.f32 %v627, 1.442695
    %v643 = vpow.pop %v642
    %v644 = vmul.f32 %v628, 1.442695
    %v645 = vpow.pop %v644
    %v646 = vmul.f32 %v629, 1.442695
    %v647 = vpow.pop %v646
    %v648 = vmul.f32 %v630, 1.442695
    %v649 = vpow.pop %v648
    %v650 = vmul.f32 %v631, 1.442695
    %v651 = vpow.pop %v650
    %v652 = vmul.f32 %v632, 1.442695
    %v653 = vpow.pop %v652
    %v654 = vmul.f32 %v633, 1.442695
    %v655 = vpow.pop %v654
    %v656 = vmul.f32 %v634, 1.442695
    %v657 = vpow.pop %v656
    %v658 = vmul.f32 %v635, 1.442695
    %v659 = vpow.pop %v658
    %v660 = vmul.f32 %v636, 1.442695
    %v661 = vpow.pop %v660
    %v662 = vmul.f32 %v637, 1.442695
    %v663 = vpow.pop %v662
    %v664 = vmul.f32 %v638, 1.442695
    %v665 = vpow.pop %v664
    %v666 = vmul.f32 %v639, 1.442695
    %v667 = vpow.pop %v666
    %v668 = vsub.f32 %v641, 1.0
    %v669 = vsub.f32 %v643, 1.0
    %v670 = vsub.f32 %v645, 1.0
    %v671 = vsub.f32 %v647, 1.0
    %v672 = vsub.f32 %v649, 1.0
    %v673 = vsub.f32 %v651, 1.0
    %v674 = vsub.f32 %v653, 1.0
    %v675 = vsub.f32 %v655, 1.0
    %v676 = vsub.f32 %v657, 1.0
    %v677 = vsub.f32 %v659, 1.0
    %v678 = vsub.f32 %v661, 1.0
    %v679 = vsub.f32 %v663, 1.0
    %v680 = vsub.f32 %v665, 1.0
    %v681 = vsub.f32 %v667, 1.0
    %v682 = vsel %vm612, %v546, %v668
    %v683 = vsel %vm613, %v554, %v669
    %v684 = vsel %vm614, %v553, %v670
    %v685 = vsel %vm615, %v555, %v671
    %v686 = vsel %vm616, %v563, %v672
    %v687 = vsel %vm617, %v571, %v673
    %v688 = vsel %vm618, %v570, %v674
    %v689 = vsel %vm619, %v572, %v675
    %v690 = vsel %vm620, %v580, %v676
    %v691 = vsel %vm621, %v588, %v677
    %v692 = vsel %vm622, %v587, %v678
    %v693 = vsel %vm623, %v589, %v679
    %v694 = vsel %vm624, %v596, %v680
    %v695 = vsel %vm625, %v597, %v681
    %v710 = vcombine.low %v682, %v683
    %v711 = vcombine.low %v684, %v685
    %v713 = vunpack.c.l.s4 1983009808
    %v714 = vunpack.c.0.s8 %v713
    %v715 = vlaneseq
    %v716 = vshrl.u32 %v715, 7
    %v717 = vsub.s32 %v714, %v716
    %v718 = vrot.slane %v710, %v717
    %v720 = vunpack.c.l.s4 1983009808
    %v721 = vunpack.c.0.s8 %v720
    %v722 = vlaneseq
    %v723 = vshrl.u32 %v722, 7
    %v724 = vsub.s32 %v721, %v723
    %v725 = vrot.slane %v711, %v724
    %v726 = vcombine.low %v718, %v725
    %v727 = vcombine.low %v686, %v687
    %v729 = vunpack.c.l.s4 1983009808
    %v730 = vunpack.c.0.s8 %v729
    %v731 = vlaneseq
    %v732 = vshrl.u32 %v731, 7
    %v733 = vsub.s32 %v730, %v732
    %v734 = vrot.slane %v727, %v733
    %v736 = vunpack.c.l.s4 1983009808
    %v737 = vunpack.c.0.s8 %v736
    %v738 = vlaneseq
    %v739 = vshrl.u32 %v738, 7
    %v740 = vsub.s32 %v737, %v739
    %v741 = vrot.slane %v688, %v740
    %v742 = vcombine.low %v734, %v741
    %v743 = vcombine.low %v689, %v690
    %v744 = vcombine.low %v691, %v692
    %v746 = vunpack.c.l.s4 1983009808
    %v747 = vunpack.c.0.s8 %v746
    %v748 = vlaneseq
    %v749 = vshrl.u32 %v748, 7
    %v750 = vsub.s32 %v747, %v749
    %v751 = vrot.slane %v743, %v750
    %v753 = vunpack.c.l.s4 1983009808
    %v754 = vunpack.c.0.s8 %v753
    %v755 = vlaneseq
    %v756 = vshrl.u32 %v755, 7
    %v757 = vsub.s32 %v754, %v756
    %v758 = vrot.slane %v744, %v757
    %v759 = vcombine.low %v751, %v758
    %v760 = vcombine.low %v693, %v694
    %v762 = vunpack.c.l.s4 1983009808
    %v763 = vunpack.c.0.s8 %v762
    %v764 = vlaneseq
    %v765 = vshrl.u32 %v764, 7
    %v766 = vsub.s32 %v763, %v765
    %v767 = vrot.slane %v760, %v766
    %v769 = vunpack.c.l.s4 1983009808
    %v770 = vunpack.c.0.s8 %v769
    %v771 = vlaneseq
    %v772 = vshrl.u32 %v771, 7
    %v773 = vsub.s32 %v770, %v772
    %v774 = vrot.slane %v695, %v773
    %v775 = vcombine.low %v767, %v774
    %vm780 = vcmask 64512
    %v781 = vsel %vm780, %v726, -inf
    %vm782 = vcmask 62464
    %v783 = vsel %vm782, %v742, -inf
    %v784 = vmax.f32 %v781, %v783
    %v785 = vrot.slane %v784, 4
    %v786 = vmax.f32 %v784, %v785
    %v787 = vrot.slane %v786, 2
    %v788 = vmax.f32 %v786, %v787
    %v789 = vrot.slane %v788, 1
    %v790 = vmax.f32 %v788, %v789
    %v791 = vsel %vm780, %v759, -inf
    %v792 = vsel %vm782, %v775, -inf
    %v793 = vmax.f32 %v791, %v792
    %v794 = vrot.slane %v793, 4
    %v795 = vmax.f32 %v793, %v794
    %v796 = vrot.slane %v795, 2
    %v797 = vmax.f32 %v795, %v796
    %v798 = vrot.slane %v797, 1
    %v799 = vmax.f32 %v797, %v798
    %vm800 = vcmask 1044480
    %v801 = vrot.slane %v160, 3
    %v802 = vrot.slane %v165, 3
    %v803 = vsel %vm800, %v801, %v802
    %v804 = vrot.slane %v170, 3
    %v805 = vrot.slane %v175, 3
    %v806 = vsel %vm800, %v804, %v805
    %807 = vrot.lane.b32.xlu0 %v803, 96
    %v808 = vpop.permute.xlu0 %807
    %809 = vrot.lane.b32.xlu0 %v802, 96
    %v810 = vpop.permute.xlu0 %809
    %811 = vrot.lane.b32.xlu0 %v806, 96
    %v812 = vpop.permute.xlu0 %811
    %813 = vrot.lane.b32.xlu0 %v805, 96
    %v814 = vpop.permute.xlu0 %813
    %v819 = vsel %vm441, %v226, %v808
    %v820 = vsel %vm441, %v227, %v810
    %v821 = vsel %vm441, %v228, %v812
    %v822 = vsel %vm441, %v229, %v814
    %v823 = vld [vmem:[%s4] sm:$0xff]
    %v824 = vld [vmem:[%s4 + $0x8] sm:$0xff]
    %v825 = vld [vmem:[%s4 + $0x10] sm:$0xff]
    %v826 = vld [vmem:[%s4 + $0x18] sm:$0xff]
    %v827 = vld [vmem:[%s4 + $0x20] sm:$0xff]
    %v828 = vld [vmem:[%s4 + $0x28] sm:$0xff]
    %v829 = vld [vmem:[%s4 + $0x30] sm:$0xff]
    %v830 = vld [vmem:[%s4 + $0x38] sm:$0xff]
    %v831 = vld [vmem:[%s4 + $0x40] sm:$0xff]
    %v832 = vld [vmem:[%s4 + $0x48] sm:$0xff]
    %v833 = vld [vmem:[%s4 + $0x50] sm:$0xff]
    %v834 = vld [vmem:[%s4 + $0x58] sm:$0xff]
    %v835 = vld [vmem:[%s4 + $0x60] sm:$0xff]
    %v836 = vld [vmem:[%s4 + $0x68] sm:$0xff]
    %v837 = vld [vmem:[%s4 + $0x70] sm:$0xff]
    %v838 = vld [vmem:[%s4 + $0x78] sm:$0xff]
    %v839 = vld [vmem:[%s5] sm:$0x1]
    %v841 = vlaneseq
    %v842 = vshrl.u32 %v841, 7
    %v843 = vsub.s32 0, %v842
    %v844 = vrot.slane %v839, %v843
    %v849 = vcombine.high %v819, %v819
    %v851 = vunpack.c.l.s4 1966171168
    %v852 = vunpack.c.0.s8 %v851
    %v853 = vlaneseq
    %v854 = vshrl.u32 %v853, 7
    %v855 = vsub.s32 %v852, %v854
    %v856 = vrot.slane %v819, %v855
    %v858 = vunpack.c.l.s4 1966171168
    %v859 = vunpack.c.0.s8 %v858
    %v860 = vlaneseq
    %v861 = vshrl.u32 %v860, 7
    %v862 = vsub.s32 %v859, %v861
    %v863 = vrot.slane %v849, %v862
    %v864 = vcombine.high %v856, %v856
    %v865 = vcombine.high %v863, %v863
    %v867 = vunpack.c.l.s4 1966171168
    %v868 = vunpack.c.0.s8 %v867
    %v869 = vlaneseq
    %v870 = vshrl.u32 %v869, 7
    %v871 = vsub.s32 %v868, %v870
    %v872 = vrot.slane %v856, %v871
    %v874 = vunpack.c.l.s4 1966171168
    %v875 = vunpack.c.0.s8 %v874
    %v876 = vlaneseq
    %v877 = vshrl.u32 %v876, 7
    %v878 = vsub.s32 %v875, %v877
    %v879 = vrot.slane %v863, %v878
    %v881 = vunpack.c.l.s4 1966171168
    %v882 = vunpack.c.0.s8 %v881
    %v883 = vlaneseq
    %v884 = vshrl.u32 %v883, 7
    %v885 = vsub.s32 %v882, %v884
    %v886 = vrot.slane %v864, %v885
    %v888 = vunpack.c.l.s4 1966171168
    %v889 = vunpack.c.0.s8 %v888
    %v890 = vlaneseq
    %v891 = vshrl.u32 %v890, 7
    %v892 = vsub.s32 %v889, %v891
    %v893 = vrot.slane %v865, %v892
    %v894 = vcombine.high %v872, %v872
    %v895 = vcombine.high %v879, %v879
    %v896 = vcombine.high %v886, %v886
    %v897 = vcombine.high %v893, %v893
    %v898 = vcombine.high %v820, %v820
    %v900 = vunpack.c.l.s4 1966171168
    %v901 = vunpack.c.0.s8 %v900
    %v902 = vlaneseq
    %v903 = vshrl.u32 %v902, 7
    %v904 = vsub.s32 %v901, %v903
    %v905 = vrot.slane %v820, %v904
    %v907 = vunpack.c.l.s4 1966171168
    %v908 = vunpack.c.0.s8 %v907
    %v909 = vlaneseq
    %v910 = vshrl.u32 %v909, 7
    %v911 = vsub.s32 %v908, %v910
    %v912 = vrot.slane %v898, %v911
    %v913 = vcombine.high %v905, %v905
    %v915 = vunpack.c.l.s4 1966171168
    %v916 = vunpack.c.0.s8 %v915
    %v917 = vlaneseq
    %v918 = vshrl.u32 %v917, 7
    %v919 = vsub.s32 %v916, %v918
    %v920 = vrot.slane %v905, %v919
    %v922 = vunpack.c.l.s4 1966171168
    %v923 = vunpack.c.0.s8 %v922
    %v924 = vlaneseq
    %v925 = vshrl.u32 %v924, 7
    %v926 = vsub.s32 %v923, %v925
    %v927 = vrot.slane %v912, %v926
    %v929 = vunpack.c.l.s4 1966171168
    %v930 = vunpack.c.0.s8 %v929
    %v931 = vlaneseq
    %v932 = vshrl.u32 %v931, 7
    %v933 = vsub.s32 %v930, %v932
    %v934 = vrot.slane %v913, %v933
    %v935 = vcombine.high %v920, %v920
    %v936 = vcombine.high %v934, %v934
    %v937 = vcombine.high %v821, %v821
    %v939 = vunpack.c.l.s4 1966171168
    %v940 = vunpack.c.0.s8 %v939
    %v941 = vlaneseq
    %v942 = vshrl.u32 %v941, 7
    %v943 = vsub.s32 %v940, %v942
    %v944 = vrot.slane %v821, %v943
    %v946 = vunpack.c.l.s4 1966171168
    %v947 = vunpack.c.0.s8 %v946
    %v948 = vlaneseq
    %v949 = vshrl.u32 %v948, 7
    %v950 = vsub.s32 %v947, %v949
    %v951 = vrot.slane %v937, %v950
    %v952 = vcombine.high %v944, %v944
    %v953 = vcombine.high %v951, %v951
    %v955 = vunpack.c.l.s4 1966171168
    %v956 = vunpack.c.0.s8 %v955
    %v957 = vlaneseq
    %v958 = vshrl.u32 %v957, 7
    %v959 = vsub.s32 %v956, %v958
    %v960 = vrot.slane %v944, %v959
    %v962 = vunpack.c.l.s4 1966171168
    %v963 = vunpack.c.0.s8 %v962
    %v964 = vlaneseq
    %v965 = vshrl.u32 %v964, 7
    %v966 = vsub.s32 %v963, %v965
    %v967 = vrot.slane %v951, %v966
    %v969 = vunpack.c.l.s4 1966171168
    %v970 = vunpack.c.0.s8 %v969
    %v971 = vlaneseq
    %v972 = vshrl.u32 %v971, 7
    %v973 = vsub.s32 %v970, %v972
    %v974 = vrot.slane %v952, %v973
    %v976 = vunpack.c.l.s4 1966171168
    %v977 = vunpack.c.0.s8 %v976
    %v978 = vlaneseq
    %v979 = vshrl.u32 %v978, 7
    %v980 = vsub.s32 %v977, %v979
    %v981 = vrot.slane %v953, %v980
    %v982 = vcombine.high %v960, %v960
    %v983 = vcombine.high %v967, %v967
    %v984 = vcombine.high %v974, %v974
    %v985 = vcombine.high %v981, %v981
    %v986 = vcombine.high %v822, %v822
    %v988 = vunpack.c.l.s4 1966171168
    %v989 = vunpack.c.0.s8 %v988
    %v990 = vlaneseq
    %v991 = vshrl.u32 %v990, 7
    %v992 = vsub.s32 %v989, %v991
    %v993 = vrot.slane %v822, %v992
    %v995 = vunpack.c.l.s4 1966171168
    %v996 = vunpack.c.0.s8 %v995
    %v997 = vlaneseq
    %v998 = vshrl.u32 %v997, 7
    %v999 = vsub.s32 %v996, %v998
    %v1000 = vrot.slane %v986, %v999
    %v1001 = vcombine.high %v993, %v993
    %v1003 = vunpack.c.l.s4 1966171168
    %v1004 = vunpack.c.0.s8 %v1003
    %v1005 = vlaneseq
    %v1006 = vshrl.u32 %v1005, 7
    %v1007 = vsub.s32 %v1004, %v1006
    %v1008 = vrot.slane %v993, %v1007
    %v1010 = vunpack.c.l.s4 1966171168
    %v1011 = vunpack.c.0.s8 %v1010
    %v1012 = vlaneseq
    %v1013 = vshrl.u32 %v1012, 7
    %v1014 = vsub.s32 %v1011, %v1013
    %v1015 = vrot.slane %v1000, %v1014
    %v1017 = vunpack.c.l.s4 1966171168
    %v1018 = vunpack.c.0.s8 %v1017
    %v1019 = vlaneseq
    %v1020 = vshrl.u32 %v1019, 7
    %v1021 = vsub.s32 %v1018, %v1020
    %v1022 = vrot.slane %v1001, %v1021
    %v1023 = vcombine.high %v1008, %v1008
    %v1024 = vcombine.high %v1022, %v1022
    %v1025 = vcombine.high %v844, %v844
    %v1027 = vunpack.c.l.s4 1966171168
    %v1028 = vunpack.c.0.s8 %v1027
    %v1029 = vlaneseq
    %v1030 = vshrl.u32 %v1029, 7
    %v1031 = vsub.s32 %v1028, %v1030
    %v1032 = vrot.slane %v844, %v1031
    %v1034 = vunpack.c.l.s4 1966171168
    %v1035 = vunpack.c.0.s8 %v1034
    %v1036 = vlaneseq
    %v1037 = vshrl.u32 %v1036, 7
    %v1038 = vsub.s32 %v1035, %v1037
    %v1039 = vrot.slane %v1025, %v1038
    %v1040 = vcombine.high %v1032, %v1032
    %v1041 = vcombine.high %v1039, %v1039
    %v1043 = vunpack.c.l.s4 1966171168
    %v1044 = vunpack.c.0.s8 %v1043
    %v1045 = vlaneseq
    %v1046 = vshrl.u32 %v1045, 7
    %v1047 = vsub.s32 %v1044, %v1046
    %v1048 = vrot.slane %v1032, %v1047
    %v1050 = vunpack.c.l.s4 1966171168
    %v1051 = vunpack.c.0.s8 %v1050
    %v1052 = vlaneseq
    %v1053 = vshrl.u32 %v1052, 7
    %v1054 = vsub.s32 %v1051, %v1053
    %v1055 = vrot.slane %v1039, %v1054
    %v1057 = vunpack.c.l.s4 1966171168
    %v1058 = vunpack.c.0.s8 %v1057
    %v1059 = vlaneseq
    %v1060 = vshrl.u32 %v1059, 7
    %v1061 = vsub.s32 %v1058, %v1060
    %v1062 = vrot.slane %v1040, %v1061
    %v1064 = vunpack.c.l.s4 1966171168
    %v1065 = vunpack.c.0.s8 %v1064
    %v1066 = vlaneseq
    %v1067 = vshrl.u32 %v1066, 7
    %v1068 = vsub.s32 %v1065, %v1067
    %v1069 = vrot.slane %v1041, %v1068
    %v1070 = vcombine.high %v1048, %v1048
    %v1071 = vcombine.high %v1055, %v1055
    %v1072 = vcombine.high %v1062, %v1062
    %v1073 = vcombine.high %v1069, %v1069
    %v1074 = vcombine.low %v872, %v886
    %v1075 = vcombine.low %v894, %v896
    %v1076 = vcombine.low %v879, %v893
    %v1077 = vcombine.low %v895, %v897
    %v1079 = vunpack.c.l.s4 1966171168
    %v1080 = vunpack.c.0.s8 %v1079
    %v1081 = vlaneseq
    %v1082 = vshrl.u32 %v1081, 7
    %v1083 = vsub.s32 %v1080, %v1082
    %v1084 = vrot.slane %v1074, %v1083
    %v1086 = vunpack.c.l.s4 1966171168
    %v1087 = vunpack.c.0.s8 %v1086
    %v1088 = vlaneseq
    %v1089 = vshrl.u32 %v1088, 7
    %v1090 = vsub.s32 %v1087, %v1089
    %v1091 = vrot.slane %v1075, %v1090
    %v1093 = vunpack.c.l.s4 1966171168
    %v1094 = vunpack.c.0.s8 %v1093
    %v1095 = vlaneseq
    %v1096 = vshrl.u32 %v1095, 7
    %v1097 = vsub.s32 %v1094, %v1096
    %v1098 = vrot.slane %v1076, %v1097
    %v1100 = vunpack.c.l.s4 1966171168
    %v1101 = vunpack.c.0.s8 %v1100
    %v1102 = vlaneseq
    %v1103 = vshrl.u32 %v1102, 7
    %v1104 = vsub.s32 %v1101, %v1103
    %v1105 = vrot.slane %v1077, %v1104
    %v1106 = vcombine.low %v1084, %v1091
    %v1107 = vcombine.low %v1098, %v1105
    %v1109 = vunpack.c.l.s4 1966171168
    %v1110 = vunpack.c.0.s8 %v1109
    %v1111 = vlaneseq
    %v1112 = vshrl.u32 %v1111, 7
    %v1113 = vsub.s32 %v1110, %v1112
    %v1114 = vrot.slane %v1106, %v1113
    %v1116 = vunpack.c.l.s4 1966171168
    %v1117 = vunpack.c.0.s8 %v1116
    %v1118 = vlaneseq
    %v1119 = vshrl.u32 %v1118, 7
    %v1120 = vsub.s32 %v1117, %v1119
    %v1121 = vrot.slane %v1107, %v1120
    %v1122 = vcombine.low %v1114, %v1121
    %v1123 = vcombine.low %v920, %v934
    %v1124 = vcombine.low %v935, %v936
    %v1125 = vcombine.low %v927, %v960
    %v1126 = vcombine.low %v974, %v982
    %v1128 = vunpack.c.l.s4 1966171168
    %v1129 = vunpack.c.0.s8 %v1128
    %v1130 = vlaneseq
    %v1131 = vshrl.u32 %v1130, 7
    %v1132 = vsub.s32 %v1129, %v1131
    %v1133 = vrot.slane %v1123, %v1132
    %v1135 = vunpack.c.l.s4 1966171168
    %v1136 = vunpack.c.0.s8 %v1135
    %v1137 = vlaneseq
    %v1138 = vshrl.u32 %v1137, 7
    %v1139 = vsub.s32 %v1136, %v1138
    %v1140 = vrot.slane %v1124, %v1139
    %v1142 = vunpack.c.l.s4 1966171168
    %v1143 = vunpack.c.0.s8 %v1142
    %v1144 = vlaneseq
    %v1145 = vshrl.u32 %v1144, 7
    %v1146 = vsub.s32 %v1143, %v1145
    %v1147 = vrot.slane %v1125, %v1146
    %v1149 = vunpack.c.l.s4 1966171168
    %v1150 = vunpack.c.0.s8 %v1149
    %v1151 = vlaneseq
    %v1152 = vshrl.u32 %v1151, 7
    %v1153 = vsub.s32 %v1150, %v1152
    %v1154 = vrot.slane %v1126, %v1153
    %v1155 = vcombine.low %v1133, %v1140
    %v1156 = vcombine.low %v1147, %v1154
    %v1158 = vunpack.c.l.s4 1966171168
    %v1159 = vunpack.c.0.s8 %v1158
    %v1160 = vlaneseq
    %v1161 = vshrl.u32 %v1160, 7
    %v1162 = vsub.s32 %v1159, %v1161
    %v1163 = vrot.slane %v1155, %v1162
    %v1165 = vunpack.c.l.s4 1966171168
    %v1166 = vunpack.c.0.s8 %v1165
    %v1167 = vlaneseq
    %v1168 = vshrl.u32 %v1167, 7
    %v1169 = vsub.s32 %v1166, %v1168
    %v1170 = vrot.slane %v1156, %v1169
    %v1171 = vcombine.low %v1163, %v1170
    %v1172 = vcombine.low %v984, %v967
    %v1173 = vcombine.low %v981, %v983
    %v1174 = vcombine.low %v985, %v1008
    %v1175 = vcombine.low %v1022, %v1023
    %v1177 = vunpack.c.l.s4 1966171168
    %v1178 = vunpack.c.0.s8 %v1177
    %v1179 = vlaneseq
    %v1180 = vshrl.u32 %v1179, 7
    %v1181 = vsub.s32 %v1178, %v1180
    %v1182 = vrot.slane %v1172, %v1181
    %v1184 = vunpack.c.l.s4 1966171168
    %v1185 = vunpack.c.0.s8 %v1184
    %v1186 = vlaneseq
    %v1187 = vshrl.u32 %v1186, 7
    %v1188 = vsub.s32 %v1185, %v1187
    %v1189 = vrot.slane %v1173, %v1188
    %v1191 = vunpack.c.l.s4 1966171168
    %v1192 = vunpack.c.0.s8 %v1191
    %v1193 = vlaneseq
    %v1194 = vshrl.u32 %v1193, 7
    %v1195 = vsub.s32 %v1192, %v1194
    %v1196 = vrot.slane %v1174, %v1195
    %v1198 = vunpack.c.l.s4 1966171168
    %v1199 = vunpack.c.0.s8 %v1198
    %v1200 = vlaneseq
    %v1201 = vshrl.u32 %v1200, 7
    %v1202 = vsub.s32 %v1199, %v1201
    %v1203 = vrot.slane %v1175, %v1202
    %v1204 = vcombine.low %v1182, %v1189
    %v1205 = vcombine.low %v1196, %v1203
    %v1207 = vunpack.c.l.s4 1966171168
    %v1208 = vunpack.c.0.s8 %v1207
    %v1209 = vlaneseq
    %v1210 = vshrl.u32 %v1209, 7
    %v1211 = vsub.s32 %v1208, %v1210
    %v1212 = vrot.slane %v1204, %v1211
    %v1214 = vunpack.c.l.s4 1966171168
    %v1215 = vunpack.c.0.s8 %v1214
    %v1216 = vlaneseq
    %v1217 = vshrl.u32 %v1216, 7
    %v1218 = vsub.s32 %v1215, %v1217
    %v1219 = vrot.slane %v1205, %v1218
    %v1220 = vcombine.low %v1212, %v1219
    %v1221 = vcombine.low %v1024, %v1015
    %v1223 = vunpack.c.l.s4 1966171168
    %v1224 = vunpack.c.0.s8 %v1223
    %v1225 = vlaneseq
    %v1226 = vshrl.u32 %v1225, 7
    %v1227 = vsub.s32 %v1224, %v1226
    %v1228 = vrot.slane %v1221, %v1227
    %v1230 = vunpack.c.l.s4 1966171168
    %v1231 = vunpack.c.0.s8 %v1230
    %v1232 = vlaneseq
    %v1233 = vshrl.u32 %v1232, 7
    %v1234 = vsub.s32 %v1231, %v1233
    %v1235 = vrot.slane %v1228, %v1234
    %v1240 = vcombine.low %v1048, %v1062
    %v1241 = vcombine.low %v1070, %v1072
    %v1242 = vcombine.low %v1055, %v1069
    %v1243 = vcombine.low %v1071, %v1073
    %v1245 = vunpack.c.l.s4 1966171168
    %v1246 = vunpack.c.0.s8 %v1245
    %v1247 = vlaneseq
    %v1248 = vshrl.u32 %v1247, 7
    %v1249 = vsub.s32 %v1246, %v1248
    %v1250 = vrot.slane %v1240, %v1249
    %v1252 = vunpack.c.l.s4 1966171168
    %v1253 = vunpack.c.0.s8 %v1252
    %v1254 = vlaneseq
    %v1255 = vshrl.u32 %v1254, 7
    %v1256 = vsub.s32 %v1253, %v1255
    %v1257 = vrot.slane %v1241, %v1256
    %v1259 = vunpack.c.l.s4 1966171168
    %v1260 = vunpack.c.0.s8 %v1259
    %v1261 = vlaneseq
    %v1262 = vshrl.u32 %v1261, 7
    %v1263 = vsub.s32 %v1260, %v1262
    %v1264 = vrot.slane %v1242, %v1263
    %v1266 = vunpack.c.l.s4 1966171168
    %v1267 = vunpack.c.0.s8 %v1266
    %v1268 = vlaneseq
    %v1269 = vshrl.u32 %v1268, 7
    %v1270 = vsub.s32 %v1267, %v1269
    %v1271 = vrot.slane %v1243, %v1270
    %v1272 = vcombine.low %v1250, %v1257
    %v1273 = vcombine.low %v1264, %v1271
    %v1275 = vunpack.c.l.s4 1966171168
    %v1276 = vunpack.c.0.s8 %v1275
    %v1277 = vlaneseq
    %v1278 = vshrl.u32 %v1277, 7
    %v1279 = vsub.s32 %v1276, %v1278
    %v1280 = vrot.slane %v1272, %v1279
    %v1282 = vunpack.c.l.s4 1966171168
    %v1283 = vunpack.c.0.s8 %v1282
    %v1284 = vlaneseq
    %v1285 = vshrl.u32 %v1284, 7
    %v1286 = vsub.s32 %v1283, %v1285
    %v1287 = vrot.slane %v1273, %v1286
    %v1288 = vcombine.low %v1280, %v1287
    %v1289 = vcombine.low %v1055, %v1048
    %v1290 = vcombine.low %v1062, %v1070
    %v1292 = vunpack.c.l.s4 1966171168
    %v1293 = vunpack.c.0.s8 %v1292
    %v1294 = vlaneseq
    %v1295 = vshrl.u32 %v1294, 7
    %v1296 = vsub.s32 %v1293, %v1295
    %v1297 = vrot.slane %v1289, %v1296
    %v1299 = vunpack.c.l.s4 1966171168
    %v1300 = vunpack.c.0.s8 %v1299
    %v1301 = vlaneseq
    %v1302 = vshrl.u32 %v1301, 7
    %v1303 = vsub.s32 %v1300, %v1302
    %v1304 = vrot.slane %v1290, %v1303
    %v1305 = vcombine.low %v1297, %v1304
    %v1307 = vunpack.c.l.s4 1966171168
    %v1308 = vunpack.c.0.s8 %v1307
    %v1309 = vlaneseq
    %v1310 = vshrl.u32 %v1309, 7
    %v1311 = vsub.s32 %v1308, %v1310
    %v1312 = vrot.slane %v1305, %v1311
    %v1313 = vcombine.low %v1280, %v1312
    %v1314 = vcombine.low %v1072, %v1055
    %v1315 = vcombine.low %v1069, %v1071
    %v1316 = vcombine.low %v1073, %v1048
    %v1318 = vunpack.c.l.s4 1966171168
    %v1319 = vunpack.c.0.s8 %v1318
    %v1320 = vlaneseq
    %v1321 = vshrl.u32 %v1320, 7
    %v1322 = vsub.s32 %v1319, %v1321
    %v1323 = vrot.slane %v1314, %v1322
    %v1325 = vunpack.c.l.s4 1966171168
    %v1326 = vunpack.c.0.s8 %v1325
    %v1327 = vlaneseq
    %v1328 = vshrl.u32 %v1327, 7
    %v1329 = vsub.s32 %v1326, %v1328
    %v1330 = vrot.slane %v1315, %v1329
    %v1332 = vunpack.c.l.s4 1966171168
    %v1333 = vunpack.c.0.s8 %v1332
    %v1334 = vlaneseq
    %v1335 = vshrl.u32 %v1334, 7
    %v1336 = vsub.s32 %v1333, %v1335
    %v1337 = vrot.slane %v1316, %v1336
    %v1338 = vcombine.low %v1323, %v1330
    %v1339 = vcombine.low %v1337, %v1304
    %v1341 = vunpack.c.l.s4 1966171168
    %v1342 = vunpack.c.0.s8 %v1341
    %v1343 = vlaneseq
    %v1344 = vshrl.u32 %v1343, 7
    %v1345 = vsub.s32 %v1342, %v1344
    %v1346 = vrot.slane %v1338, %v1345
    %v1348 = vunpack.c.l.s4 1966171168
    %v1349 = vunpack.c.0.s8 %v1348
    %v1350 = vlaneseq
    %v1351 = vshrl.u32 %v1350, 7
    %v1352 = vsub.s32 %v1349, %v1351
    %v1353 = vrot.slane %v1339, %v1352
    %v1354 = vcombine.low %v1346, %v1353
    %v1356 = vunpack.c.l.s4 1966171168
    %v1357 = vunpack.c.0.s8 %v1356
    %v1358 = vlaneseq
    %v1359 = vshrl.u32 %v1358, 7
    %v1360 = vsub.s32 %v1357, %v1359
    %v1361 = vrot.slane %v1323, %v1360
    %1366 = vmatprep.subr.mxu0 0.0
    %1367 = vmatpush1.msra.mxu0 %v838
    %1368 = vmatprep.subr.mxu0 0.0
    %1369 = vmatpush1.msra.mxu0 %v837
    %1370 = vmatprep.subr.mxu0 0.0
    %1371 = vmatpush1.msra.mxu0 %v836
    %1372 = vmatprep.subr.mxu0 0.0
    %1373 = vmatpush1.msra.mxu0 %v835
    %1374 = vmatprep.subr.mxu0 0.0
    %1375 = vmatpush1.msra.mxu0 %v834
    %1376 = vmatprep.subr.mxu0 0.0
    %1377 = vmatpush1.msra.mxu0 %v833
    %1378 = vmatprep.subr.mxu0 0.0
    %1379 = vmatpush1.msra.mxu0 %v832
    %1380 = vmatprep.subr.mxu0 0.0
    %1381 = vmatpush1.msra.mxu0 %v831
    %1382 = vmatprep.subr.mxu0 0.0
    %1383 = vmatpush1.msra.mxu0 %v830
    %1384 = vmatprep.subr.mxu0 0.0
    %1385 = vmatpush1.msra.mxu0 %v829
    %1386 = vmatprep.subr.mxu0 0.0
    %1387 = vmatpush1.msra.mxu0 %v828
    %1388 = vmatprep.subr.mxu0 0.0
    %1389 = vmatpush1.msra.mxu0 %v827
    %1390 = vmatprep.subr.mxu0 0.0
    %1391 = vmatpush1.msra.mxu0 %v826
    %1392 = vmatprep.subr.mxu0 0.0
    %1393 = vmatpush1.msra.mxu0 %v825
    %1394 = vmatprep.subr.mxu0 0.0
    %1395 = vmatpush1.msra.mxu0 %v824
    %1396 = vmatprep.subr.mxu0 0.0
    %1397 = vmatpush1.msra.mxu0 %v823
    %1398 = vmatprep.subr.mxu0 0.0
    %1399 = vmatpush2.msra.mxu0 0.0
    %1400 = vmatprep.subr.mxu0 0.0
    %1401 = vmatpush2.msra.mxu0 0.0
    %1402 = vmatprep.subr.mxu0 0.0
    %1403 = vmatpush2.msra.mxu0 0.0
    %1404 = vmatprep.subr.mxu0 0.0
    %1405 = vmatpush2.msra.mxu0 0.0
    %1406 = vmatprep.subr.mxu0 0.0
    %1407 = vmatpush2.msra.mxu0 0.0
    %1408 = vmatprep.subr.mxu0 0.0
    %1409 = vmatpush2.msra.mxu0 0.0
    %1410 = vmatprep.subr.mxu0 0.0
    %1411 = vmatpush2.msra.mxu0 0.0
    %1412 = vmatprep.subr.mxu0 0.0
    %1413 = vmatpush2.msra.mxu0 0.0
    %1414 = vmatprep.subr.mxu0 0.0
    %1415 = vmatpush2.msra.mxu0 0.0
    %1416 = vmatprep.subr.mxu0 0.0
    %1417 = vmatpush2.msra.mxu0 0.0
    %1418 = vmatprep.subr.mxu0 0.0
    %1419 = vmatpush2.msra.mxu0 0.0
    %1420 = vmatprep.subr.mxu0 0.0
    %1421 = vmatpush2.msra.mxu0 0.0
    %1422 = vmatprep.subr.mxu0 0.0
    %1423 = vmatpush2.msra.mxu0 0.0
    %1424 = vmatprep.subr.mxu0 0.0
    %1425 = vmatpush2.msra.mxu0 0.0
    %1426 = vmatprep.subr.mxu0 0.0
    %1427 = vmatpush2.msra.mxu0 0.0
    %1428 = vmatprep.subr.mxu0 0.0
    %1429 = vmatpush2.msra.mxu0 0.0
    %1430 = vmatprep.mubr.f32.mxu0 0.0
    %1431 = vmatmul.mubr.f32.gmra.mxu0 %v1122
    %v1432 = vpop.f32.mrf.mxu0
    %v1433 = vadd.f32 %v1288, %v1432
    %v1434 = vpop.f32.mrf.mxu0
    %1435 = vmatprep.mubr.f32.mxu0 0.0
    %1436 = vmatmul.mubr.f32.gmra.mxu0 %v1171
    %v1437 = vpop.f32.mrf.mxu0
    %v1438 = vadd.f32 %v1313, %v1437
    %v1439 = vpop.f32.mrf.mxu0
    %1440 = vmatprep.mubr.f32.mxu0 0.0
    %1441 = vmatmul.mubr.f32.gmra.mxu0 %v1220
    %v1442 = vpop.f32.mrf.mxu0
    %v1443 = vadd.f32 %v1354, %v1442
    %v1444 = vpop.f32.mrf.mxu0
    %1445 = vmatprep.mubr.f32.mxu0 0.0
    %1446 = vmatmul.mubr.f32.gmra.mxu0 %v1235
    %v1447 = vpop.f32.mrf.mxu0
    %v1448 = vadd.f32 %v1361, %v1447
    %v1449 = vpop.f32.mrf.mxu0
    %1450 = vdwg.mxu0
    %v1455 = vcombine.high %v1433, %v1433
    %v1457 = vunpack.c.l.s4 1966171168
    %v1458 = vunpack.c.0.s8 %v1457
    %v1459 = vlaneseq
    %v1460 = vshrl.u32 %v1459, 7
    %v1461 = vsub.s32 %v1458, %v1460
    %v1462 = vrot.slane %v1433, %v1461
    %v1464 = vunpack.c.l.s4 1966171168
    %v1465 = vunpack.c.0.s8 %v1464
    %v1466 = vlaneseq
    %v1467 = vshrl.u32 %v1466, 7
    %v1468 = vsub.s32 %v1465, %v1467
    %v1469 = vrot.slane %v1455, %v1468
    %v1470 = vcombine.high %v1462, %v1462
    %v1471 = vcombine.high %v1469, %v1469
    %v1473 = vunpack.c.l.s4 1966171168
    %v1474 = vunpack.c.0.s8 %v1473
    %v1475 = vlaneseq
    %v1476 = vshrl.u32 %v1475, 7
    %v1477 = vsub.s32 %v1474, %v1476
    %v1478 = vrot.slane %v1462, %v1477
    %v1480 = vunpack.c.l.s4 1966171168
    %v1481 = vunpack.c.0.s8 %v1480
    %v1482 = vlaneseq
    %v1483 = vshrl.u32 %v1482, 7
    %v1484 = vsub.s32 %v1481, %v1483
    %v1485 = vrot.slane %v1469, %v1484
    %v1487 = vunpack.c.l.s4 1966171168
    %v1488 = vunpack.c.0.s8 %v1487
    %v1489 = vlaneseq
    %v1490 = vshrl.u32 %v1489, 7
    %v1491 = vsub.s32 %v1488, %v1490
    %v1492 = vrot.slane %v1470, %v1491
    %v1494 = vunpack.c.l.s4 1966171168
    %v1495 = vunpack.c.0.s8 %v1494
    %v1496 = vlaneseq
    %v1497 = vshrl.u32 %v1496, 7
    %v1498 = vsub.s32 %v1495, %v1497
    %v1499 = vrot.slane %v1471, %v1498
    %v1500 = vcombine.high %v1478, %v1478
    %v1501 = vcombine.high %v1485, %v1485
    %v1502 = vcombine.high %v1492, %v1492
    %v1503 = vcombine.high %v1499, %v1499
    %v1504 = vcombine.high %v1438, %v1438
    %v1506 = vunpack.c.l.s4 1966171168
    %v1507 = vunpack.c.0.s8 %v1506
    %v1508 = vlaneseq
    %v1509 = vshrl.u32 %v1508, 7
    %v1510 = vsub.s32 %v1507, %v1509
    %v1511 = vrot.slane %v1438, %v1510
    %v1513 = vunpack.c.l.s4 1966171168
    %v1514 = vunpack.c.0.s8 %v1513
    %v1515 = vlaneseq
    %v1516 = vshrl.u32 %v1515, 7
    %v1517 = vsub.s32 %v1514, %v1516
    %v1518 = vrot.slane %v1504, %v1517
    %v1519 = vcombine.high %v1511, %v1511
    %v1520 = vcombine.high %v1518, %v1518
    %v1522 = vunpack.c.l.s4 1966171168
    %v1523 = vunpack.c.0.s8 %v1522
    %v1524 = vlaneseq
    %v1525 = vshrl.u32 %v1524, 7
    %v1526 = vsub.s32 %v1523, %v1525
    %v1527 = vrot.slane %v1511, %v1526
    %v1529 = vunpack.c.l.s4 1966171168
    %v1530 = vunpack.c.0.s8 %v1529
    %v1531 = vlaneseq
    %v1532 = vshrl.u32 %v1531, 7
    %v1533 = vsub.s32 %v1530, %v1532
    %v1534 = vrot.slane %v1518, %v1533
    %v1536 = vunpack.c.l.s4 1966171168
    %v1537 = vunpack.c.0.s8 %v1536
    %v1538 = vlaneseq
    %v1539 = vshrl.u32 %v1538, 7
    %v1540 = vsub.s32 %v1537, %v1539
    %v1541 = vrot.slane %v1519, %v1540
    %v1543 = vunpack.c.l.s4 1966171168
    %v1544 = vunpack.c.0.s8 %v1543
    %v1545 = vlaneseq
    %v1546 = vshrl.u32 %v1545, 7
    %v1547 = vsub.s32 %v1544, %v1546
    %v1548 = vrot.slane %v1520, %v1547
    %v1549 = vcombine.high %v1527, %v1527
    %v1550 = vcombine.high %v1534, %v1534
    %v1551 = vcombine.high %v1541, %v1541
    %v1552 = vcombine.high %v1548, %v1548
    %v1553 = vcombine.high %v1443, %v1443
    %v1555 = vunpack.c.l.s4 1966171168
    %v1556 = vunpack.c.0.s8 %v1555
    %v1557 = vlaneseq
    %v1558 = vshrl.u32 %v1557, 7
    %v1559 = vsub.s32 %v1556, %v1558
    %v1560 = vrot.slane %v1443, %v1559
    %v1562 = vunpack.c.l.s4 1966171168
    %v1563 = vunpack.c.0.s8 %v1562
    %v1564 = vlaneseq
    %v1565 = vshrl.u32 %v1564, 7
    %v1566 = vsub.s32 %v1563, %v1565
    %v1567 = vrot.slane %v1553, %v1566
    %v1568 = vcombine.high %v1560, %v1560
    %v1569 = vcombine.high %v1567, %v1567
    %v1571 = vunpack.c.l.s4 1966171168
    %v1572 = vunpack.c.0.s8 %v1571
    %v1573 = vlaneseq
    %v1574 = vshrl.u32 %v1573, 7
    %v1575 = vsub.s32 %v1572, %v1574
    %v1576 = vrot.slane %v1560, %v1575
    %v1578 = vunpack.c.l.s4 1966171168
    %v1579 = vunpack.c.0.s8 %v1578
    %v1580 = vlaneseq
    %v1581 = vshrl.u32 %v1580, 7
    %v1582 = vsub.s32 %v1579, %v1581
    %v1583 = vrot.slane %v1567, %v1582
    %v1585 = vunpack.c.l.s4 1966171168
    %v1586 = vunpack.c.0.s8 %v1585
    %v1587 = vlaneseq
    %v1588 = vshrl.u32 %v1587, 7
    %v1589 = vsub.s32 %v1586, %v1588
    %v1590 = vrot.slane %v1568, %v1589
    %v1592 = vunpack.c.l.s4 1966171168
    %v1593 = vunpack.c.0.s8 %v1592
    %v1594 = vlaneseq
    %v1595 = vshrl.u32 %v1594, 7
    %v1596 = vsub.s32 %v1593, %v1595
    %v1597 = vrot.slane %v1569, %v1596
    %v1598 = vcombine.high %v1576, %v1576
    %v1599 = vcombine.high %v1583, %v1583
    %v1600 = vcombine.high %v1590, %v1590
    %v1601 = vcombine.high %v1597, %v1597
    %v1603 = vunpack.c.l.s4 1966171168
    %v1604 = vunpack.c.0.s8 %v1603
    %v1605 = vlaneseq
    %v1606 = vshrl.u32 %v1605, 7
    %v1607 = vsub.s32 %v1604, %v1606
    %v1608 = vrot.slane %v1448, %v1607
    %v1609 = vcombine.high %v1608, %v1608
    %v1611 = vunpack.c.l.s4 1966171168
    %v1612 = vunpack.c.0.s8 %v1611
    %v1613 = vlaneseq
    %v1614 = vshrl.u32 %v1613, 7
    %v1615 = vsub.s32 %v1612, %v1614
    %v1616 = vrot.slane %v1608, %v1615
    %v1618 = vunpack.c.l.s4 1966171168
    %v1619 = vunpack.c.0.s8 %v1618
    %v1620 = vlaneseq
    %v1621 = vshrl.u32 %v1620, 7
    %v1622 = vsub.s32 %v1619, %v1621
    %v1623 = vrot.slane %v1609, %v1622
    %vm1650 = vcmp.gt.f32.partialorder %v1478, 0.0
    %vm1651 = vcmp.gt.f32.partialorder %v1492, 0.0
    %vm1652 = vcmp.gt.f32.partialorder %v1500, 0.0
    %vm1653 = vcmp.gt.f32.partialorder %v1502, 0.0
    %vm1654 = vcmp.gt.f32.partialorder %v1485, 0.0
    %vm1655 = vcmp.gt.f32.partialorder %v1499, 0.0
    %vm1656 = vcmp.gt.f32.partialorder %v1501, 0.0
    %vm1657 = vcmp.gt.f32.partialorder %v1503, 0.0
    %vm1658 = vcmp.gt.f32.partialorder %v1527, 0.0
    %vm1659 = vcmp.gt.f32.partialorder %v1541, 0.0
    %vm1660 = vcmp.gt.f32.partialorder %v1549, 0.0
    %vm1661 = vcmp.gt.f32.partialorder %v1551, 0.0
    %vm1662 = vcmp.gt.f32.partialorder %v1534, 0.0
    %vm1663 = vcmp.gt.f32.partialorder %v1548, 0.0
    %vm1664 = vcmp.gt.f32.partialorder %v1550, 0.0
    %vm1665 = vcmp.gt.f32.partialorder %v1552, 0.0
    %vm1666 = vcmp.gt.f32.partialorder %v1576, 0.0
    %vm1667 = vcmp.gt.f32.partialorder %v1590, 0.0
    %vm1668 = vcmp.gt.f32.partialorder %v1598, 0.0
    %vm1669 = vcmp.gt.f32.partialorder %v1600, 0.0
    %vm1670 = vcmp.gt.f32.partialorder %v1583, 0.0
    %vm1671 = vcmp.gt.f32.partialorder %v1597, 0.0
    %vm1672 = vcmp.gt.f32.partialorder %v1599, 0.0
    %vm1673 = vcmp.gt.f32.partialorder %v1601, 0.0
    %vm1674 = vcmp.gt.f32.partialorder %v1616, 0.0
    %vm1675 = vcmp.gt.f32.partialorder %v1623, 0.0
    %v1676 = vmin.f32 %v1478, 0.0
    %v1677 = vmin.f32 %v1492, 0.0
    %v1678 = vmin.f32 %v1500, 0.0
    %v1679 = vmin.f32 %v1502, 0.0
    %v1680 = vmin.f32 %v1485, 0.0
    %v1681 = vmin.f32 %v1499, 0.0
    %v1682 = vmin.f32 %v1501, 0.0
    %v1683 = vmin.f32 %v1503, 0.0
    %v1684 = vmin.f32 %v1527, 0.0
    %v1685 = vmin.f32 %v1541, 0.0
    %v1686 = vmin.f32 %v1549, 0.0
    %v1687 = vmin.f32 %v1551, 0.0
    %v1688 = vmin.f32 %v1534, 0.0
    %v1689 = vmin.f32 %v1548, 0.0
    %v1690 = vmin.f32 %v1550, 0.0
    %v1691 = vmin.f32 %v1552, 0.0
    %v1692 = vmin.f32 %v1576, 0.0
    %v1693 = vmin.f32 %v1590, 0.0
    %v1694 = vmin.f32 %v1598, 0.0
    %v1695 = vmin.f32 %v1600, 0.0
    %v1696 = vmin.f32 %v1583, 0.0
    %v1697 = vmin.f32 %v1597, 0.0
    %v1698 = vmin.f32 %v1599, 0.0
    %v1699 = vmin.f32 %v1601, 0.0
    %v1700 = vmin.f32 %v1616, 0.0
    %v1701 = vmin.f32 %v1623, 0.0
    %v1702 = vmul.f32 %v1676, 1.442695
    %v1703 = vpow.pop %v1702
    %v1704 = vmul.f32 %v1677, 1.442695
    %v1705 = vpow.pop %v1704
    %v1706 = vmul.f32 %v1678, 1.442695
    %v1707 = vpow.pop %v1706
    %v1708 = vmul.f32 %v1679, 1.442695
    %v1709 = vpow.pop %v1708
    %v1710 = vmul.f32 %v1680, 1.442695
    %v1711 = vpow.pop %v1710
    %v1712 = vmul.f32 %v1681, 1.442695
    %v1713 = vpow.pop %v1712
    %v1714 = vmul.f32 %v1682, 1.442695
    %v1715 = vpow.pop %v1714
    %v1716 = vmul.f32 %v1683, 1.442695
    %v1717 = vpow.pop %v1716
    %v1718 = vmul.f32 %v1684, 1.442695
    %v1719 = vpow.pop %v1718
    %v1720 = vmul.f32 %v1685, 1.442695
    %v1721 = vpow.pop %v1720
    %v1722 = vmul.f32 %v1686, 1.442695
    %v1723 = vpow.pop %v1722
    %v1724 = vmul.f32 %v1687, 1.442695
    %v1725 = vpow.pop %v1724
    %v1726 = vmul.f32 %v1688, 1.442695
    %v1727 = vpow.pop %v1726
    %v1728 = vmul.f32 %v1689, 1.442695
    %v1729 = vpow.pop %v1728
    %v1730 = vmul.f32 %v1690, 1.442695
    %v1731 = vpow.pop %v1730
    %v1732 = vmul.f32 %v1691, 1.442695
    %v1733 = vpow.pop %v1732
    %v1734 = vmul.f32 %v1692, 1.442695
    %v1735 = vpow.pop %v1734
    %v1736 = vmul.f32 %v1693, 1.442695
    %v1737 = vpow.pop %v1736
    %v1738 = vmul.f32 %v1694, 1.442695
    %v1739 = vpow.pop %v1738
    %v1740 = vmul.f32 %v1695, 1.442695
    %v1741 = vpow.pop %v1740
    %v1742 = vmul.f32 %v1696, 1.442695
    %v1743 = vpow.pop %v1742
    %v1744 = vmul.f32 %v1697, 1.442695
    %v1745 = vpow.pop %v1744
    %v1746 = vmul.f32 %v1698, 1.442695
    %v1747 = vpow.pop %v1746
    %v1748 = vmul.f32 %v1699, 1.442695
    %v1749 = vpow.pop %v1748
    %v1750 = vmul.f32 %v1700, 1.442695
    %v1751 = vpow.pop %v1750
    %v1752 = vmul.f32 %v1701, 1.442695
    %v1753 = vpow.pop %v1752
    %v1754 = vsub.f32 %v1703, 1.0
    %v1755 = vsub.f32 %v1705, 1.0
    %v1756 = vsub.f32 %v1707, 1.0
    %v1757 = vsub.f32 %v1709, 1.0
    %v1758 = vsub.f32 %v1711, 1.0
    %v1759 = vsub.f32 %v1713, 1.0
    %v1760 = vsub.f32 %v1715, 1.0
    %v1761 = vsub.f32 %v1717, 1.0
    %v1762 = vsub.f32 %v1719, 1.0
    %v1763 = vsub.f32 %v1721, 1.0
    %v1764 = vsub.f32 %v1723, 1.0
    %v1765 = vsub.f32 %v1725, 1.0
    %v1766 = vsub.f32 %v1727, 1.0
    %v1767 = vsub.f32 %v1729, 1.0
    %v1768 = vsub.f32 %v1731, 1.0
    %v1769 = vsub.f32 %v1733, 1.0
    %v1770 = vsub.f32 %v1735, 1.0
    %v1771 = vsub.f32 %v1737, 1.0
    %v1772 = vsub.f32 %v1739, 1.0
    %v1773 = vsub.f32 %v1741, 1.0
    %v1774 = vsub.f32 %v1743, 1.0
    %v1775 = vsub.f32 %v1745, 1.0
    %v1776 = vsub.f32 %v1747, 1.0
    %v1777 = vsub.f32 %v1749, 1.0
    %v1778 = vsub.f32 %v1751, 1.0
    %v1779 = vsub.f32 %v1753, 1.0
    %v1780 = vsel %vm1650, %v1478, %v1754
    %v1781 = vsel %vm1651, %v1492, %v1755
    %v1782 = vsel %vm1652, %v1500, %v1756
    %v1783 = vsel %vm1653, %v1502, %v1757
    %v1784 = vsel %vm1654, %v1485, %v1758
    %v1785 = vsel %vm1655, %v1499, %v1759
    %v1786 = vsel %vm1656, %v1501, %v1760
    %v1787 = vsel %vm1657, %v1503, %v1761
    %v1788 = vsel %vm1658, %v1527, %v1762
    %v1789 = vsel %vm1659, %v1541, %v1763
    %v1790 = vsel %vm1660, %v1549, %v1764
    %v1791 = vsel %vm1661, %v1551, %v1765
    %v1792 = vsel %vm1662, %v1534, %v1766
    %v1793 = vsel %vm1663, %v1548, %v1767
    %v1794 = vsel %vm1664, %v1550, %v1768
    %v1795 = vsel %vm1665, %v1552, %v1769
    %v1796 = vsel %vm1666, %v1576, %v1770
    %v1797 = vsel %vm1667, %v1590, %v1771
    %v1798 = vsel %vm1668, %v1598, %v1772
    %v1799 = vsel %vm1669, %v1600, %v1773
    %v1800 = vsel %vm1670, %v1583, %v1774
    %v1801 = vsel %vm1671, %v1597, %v1775
    %v1802 = vsel %vm1672, %v1599, %v1776
    %v1803 = vsel %vm1673, %v1601, %v1777
    %v1804 = vsel %vm1674, %v1616, %v1778
    %v1805 = vsel %vm1675, %v1623, %v1779
    %v1832 = vcombine.low %v1780, %v1781
    %v1833 = vcombine.low %v1782, %v1783
    %v1834 = vcombine.low %v1784, %v1785
    %v1835 = vcombine.low %v1786, %v1787
    %v1837 = vunpack.c.l.s4 1966171168
    %v1838 = vunpack.c.0.s8 %v1837
    %v1839 = vlaneseq
    %v1840 = vshrl.u32 %v1839, 7
    %v1841 = vsub.s32 %v1838, %v1840
    %v1842 = vrot.slane %v1832, %v1841
    %v1844 = vunpack.c.l.s4 1966171168
    %v1845 = vunpack.c.0.s8 %v1844
    %v1846 = vlaneseq
    %v1847 = vshrl.u32 %v1846, 7
    %v1848 = vsub.s32 %v1845, %v1847
    %v1849 = vrot.slane %v1833, %v1848
    %v1851 = vunpack.c.l.s4 1966171168
    %v1852 = vunpack.c.0.s8 %v1851
    %v1853 = vlaneseq
    %v1854 = vshrl.u32 %v1853, 7
    %v1855 = vsub.s32 %v1852, %v1854
    %v1856 = vrot.slane %v1834, %v1855
    %v1858 = vunpack.c.l.s4 1966171168
    %v1859 = vunpack.c.0.s8 %v1858
    %v1860 = vlaneseq
    %v1861 = vshrl.u32 %v1860, 7
    %v1862 = vsub.s32 %v1859, %v1861
    %v1863 = vrot.slane %v1835, %v1862
    %v1864 = vcombine.low %v1842, %v1849
    %v1865 = vcombine.low %v1856, %v1863
    %v1867 = vunpack.c.l.s4 1966171168
    %v1868 = vunpack.c.0.s8 %v1867
    %v1869 = vlaneseq
    %v1870 = vshrl.u32 %v1869, 7
    %v1871 = vsub.s32 %v1868, %v1870
    %v1872 = vrot.slane %v1864, %v1871
    %v1874 = vunpack.c.l.s4 1966171168
    %v1875 = vunpack.c.0.s8 %v1874
    %v1876 = vlaneseq
    %v1877 = vshrl.u32 %v1876, 7
    %v1878 = vsub.s32 %v1875, %v1877
    %v1879 = vrot.slane %v1865, %v1878
    %v1880 = vcombine.low %v1872, %v1879
    %v1881 = vcombine.low %v1788, %v1789
    %v1882 = vcombine.low %v1790, %v1791
    %v1884 = vunpack.c.l.s4 1966171168
    %v1885 = vunpack.c.0.s8 %v1884
    %v1886 = vlaneseq
    %v1887 = vshrl.u32 %v1886, 7
    %v1888 = vsub.s32 %v1885, %v1887
    %v1889 = vrot.slane %v1881, %v1888
    %v1891 = vunpack.c.l.s4 1966171168
    %v1892 = vunpack.c.0.s8 %v1891
    %v1893 = vlaneseq
    %v1894 = vshrl.u32 %v1893, 7
    %v1895 = vsub.s32 %v1892, %v1894
    %v1896 = vrot.slane %v1882, %v1895
    %v1898 = vunpack.c.l.s4 1966171168
    %v1899 = vunpack.c.0.s8 %v1898
    %v1900 = vlaneseq
    %v1901 = vshrl.u32 %v1900, 7
    %v1902 = vsub.s32 %v1899, %v1901
    %v1903 = vrot.slane %v1792, %v1902
    %v1904 = vcombine.low %v1889, %v1896
    %v1906 = vunpack.c.l.s4 1966171168
    %v1907 = vunpack.c.0.s8 %v1906
    %v1908 = vlaneseq
    %v1909 = vshrl.u32 %v1908, 7
    %v1910 = vsub.s32 %v1907, %v1909
    %v1911 = vrot.slane %v1904, %v1910
    %v1913 = vunpack.c.l.s4 1966171168
    %v1914 = vunpack.c.0.s8 %v1913
    %v1915 = vlaneseq
    %v1916 = vshrl.u32 %v1915, 7
    %v1917 = vsub.s32 %v1914, %v1916
    %v1918 = vrot.slane %v1903, %v1917
    %v1919 = vcombine.low %v1911, %v1918
    %v1920 = vcombine.low %v1793, %v1794
    %v1921 = vcombine.low %v1795, %v1796
    %v1922 = vcombine.low %v1797, %v1798
    %v1923 = vcombine.low %v1799, %v1800
    %v1925 = vunpack.c.l.s4 1966171168
    %v1926 = vunpack.c.0.s8 %v1925
    %v1927 = vlaneseq
    %v1928 = vshrl.u32 %v1927, 7
    %v1929 = vsub.s32 %v1926, %v1928
    %v1930 = vrot.slane %v1920, %v1929
    %v1932 = vunpack.c.l.s4 1966171168
    %v1933 = vunpack.c.0.s8 %v1932
    %v1934 = vlaneseq
    %v1935 = vshrl.u32 %v1934, 7
    %v1936 = vsub.s32 %v1933, %v1935
    %v1937 = vrot.slane %v1921, %v1936
    %v1939 = vunpack.c.l.s4 1966171168
    %v1940 = vunpack.c.0.s8 %v1939
    %v1941 = vlaneseq
    %v1942 = vshrl.u32 %v1941, 7
    %v1943 = vsub.s32 %v1940, %v1942
    %v1944 = vrot.slane %v1922, %v1943
    %v1946 = vunpack.c.l.s4 1966171168
    %v1947 = vunpack.c.0.s8 %v1946
    %v1948 = vlaneseq
    %v1949 = vshrl.u32 %v1948, 7
    %v1950 = vsub.s32 %v1947, %v1949
    %v1951 = vrot.slane %v1923, %v1950
    %v1952 = vcombine.low %v1930, %v1937
    %v1953 = vcombine.low %v1944, %v1951
    %v1955 = vunpack.c.l.s4 1966171168
    %v1956 = vunpack.c.0.s8 %v1955
    %v1957 = vlaneseq
    %v1958 = vshrl.u32 %v1957, 7
    %v1959 = vsub.s32 %v1956, %v1958
    %v1960 = vrot.slane %v1952, %v1959
    %v1962 = vunpack.c.l.s4 1966171168
    %v1963 = vunpack.c.0.s8 %v1962
    %v1964 = vlaneseq
    %v1965 = vshrl.u32 %v1964, 7
    %v1966 = vsub.s32 %v1963, %v1965
    %v1967 = vrot.slane %v1953, %v1966
    %v1968 = vcombine.low %v1960, %v1967
    %v1969 = vcombine.low %v1801, %v1802
    %v1970 = vcombine.low %v1803, %v1804
    %v1972 = vunpack.c.l.s4 1966171168
    %v1973 = vunpack.c.0.s8 %v1972
    %v1974 = vlaneseq
    %v1975 = vshrl.u32 %v1974, 7
    %v1976 = vsub.s32 %v1973, %v1975
    %v1977 = vrot.slane %v1969, %v1976
    %v1979 = vunpack.c.l.s4 1966171168
    %v1980 = vunpack.c.0.s8 %v1979
    %v1981 = vlaneseq
    %v1982 = vshrl.u32 %v1981, 7
    %v1983 = vsub.s32 %v1980, %v1982
    %v1984 = vrot.slane %v1970, %v1983
    %v1986 = vunpack.c.l.s4 1966171168
    %v1987 = vunpack.c.0.s8 %v1986
    %v1988 = vlaneseq
    %v1989 = vshrl.u32 %v1988, 7
    %v1990 = vsub.s32 %v1987, %v1989
    %v1991 = vrot.slane %v1805, %v1990
    %v1992 = vcombine.low %v1977, %v1984
    %v1994 = vunpack.c.l.s4 1966171168
    %v1995 = vunpack.c.0.s8 %v1994
    %v1996 = vlaneseq
    %v1997 = vshrl.u32 %v1996, 7
    %v1998 = vsub.s32 %v1995, %v1997
    %v1999 = vrot.slane %v1992, %v1998
    %v2001 = vunpack.c.l.s4 1966171168
    %v2002 = vunpack.c.0.s8 %v2001
    %v2003 = vlaneseq
    %v2004 = vshrl.u32 %v2003, 7
    %v2005 = vsub.s32 %v2002, %v2004
    %v2006 = vrot.slane %v1991, %v2005
    %v2007 = vcombine.low %v1999, %v2006
    %v2012 = vsel %vm780, %v1880, -inf
    %vm2013 = vcmask 61440
    %v2014 = vsel %vm2013, %v1919, -inf
    %v2015 = vmax.f32 %v2012, %v2014
    %v2016 = vrot.slane %v2015, 4
    %v2017 = vmax.f32 %v2015, %v2016
    %v2018 = vrot.slane %v2017, 2
    %v2019 = vmax.f32 %v2017, %v2018
    %v2020 = vrot.slane %v2019, 1
    %v2021 = vmax.f32 %v2019, %v2020
    %v2022 = vsel %vm780, %v1968, -inf
    %v2023 = vsel %vm2013, %v2007, -inf
    %v2024 = vmax.f32 %v2022, %v2023
    %v2025 = vrot.slane %v2024, 4
    %v2026 = vmax.f32 %v2024, %v2025
    %v2027 = vrot.slane %v2026, 2
    %v2028 = vmax.f32 %v2026, %v2027
    %v2029 = vrot.slane %v2028, 1
    %v2030 = vmax.f32 %v2028, %v2029
    %vm2033 = vcmask 1041409
    %v2034 = vsel %vm2033, %v799, %v790
    %v2038 = vsel %vm2033, %v2030, %v2021
    %2039 = vrot.lane.b32.xlu0 %v2038, 8
    %v2040 = vpop.permute.xlu0 %2039
    %v2042 = vsel %vm780, %v2034, %v2040
    %v2043 = vld [vmem:[%s6] sm:$0xff]
    %v2044 = vld [vmem:[%s6 + $0x8] sm:$0xff]
    %v2045 = vld [vmem:[%s7] sm:$0x1]
    %v2047 = vlaneseq
    %v2048 = vshrl.u32 %v2047, 7
    %v2049 = vsub.s32 0, %v2048
    %v2050 = vrot.slane %v2045, %v2049
    %vm2052 = vcmask 130048
    %v2054 = vsel %vm2052, %v2042, 0
    %2056 = vmatprep.subr.mxu0 0.0
    %2057 = vmatpush1.msra.mxu0 0.0
    %2058 = vmatprep.subr.mxu0 0.0
    %2059 = vmatpush1.msra.mxu0 0.0
    %2060 = vmatprep.subr.mxu0 0.0
    %2061 = vmatpush1.msra.mxu0 0.0
    %2062 = vmatprep.subr.mxu0 0.0
    %2063 = vmatpush1.msra.mxu0 0.0
    %2064 = vmatprep.subr.mxu0 0.0
    %2065 = vmatpush1.msra.mxu0 0.0
    %2066 = vmatprep.subr.mxu0 0.0
    %2067 = vmatpush1.msra.mxu0 0.0
    %2068 = vmatprep.subr.mxu0 0.0
    %2069 = vmatpush1.msra.mxu0 0.0
    %2070 = vmatprep.subr.mxu0 0.0
    %2071 = vmatpush1.msra.mxu0 0.0
    %2072 = vmatprep.subr.mxu0 0.0
    %2073 = vmatpush1.msra.mxu0 0.0
    %2074 = vmatprep.subr.mxu0 0.0
    %2075 = vmatpush1.msra.mxu0 0.0
    %2076 = vmatprep.subr.mxu0 0.0
    %2077 = vmatpush1.msra.mxu0 0.0
    %2078 = vmatprep.subr.mxu0 0.0
    %2079 = vmatpush1.msra.mxu0 0.0
    %2080 = vmatprep.subr.mxu0 0.0
    %2081 = vmatpush1.msra.mxu0 0.0
    %2082 = vmatprep.subr.mxu0 0.0
    %2083 = vmatpush1.msra.mxu0 0.0
    %2084 = vmatprep.subr.mxu0 0.0
    %2085 = vmatpush1.msra.mxu0 %v2044
    %2086 = vmatprep.subr.mxu0 0.0
    %2087 = vmatpush1.msra.mxu0 %v2043
    %2088 = vmatprep.subr.mxu0 0.0
    %2089 = vmatpush2.msra.mxu0 0.0
    %2090 = vmatprep.subr.mxu0 0.0
    %2091 = vmatpush2.msra.mxu0 0.0
    %2092 = vmatprep.subr.mxu0 0.0
    %2093 = vmatpush2.msra.mxu0 0.0
    %2094 = vmatprep.subr.mxu0 0.0
    %2095 = vmatpush2.msra.mxu0 0.0
    %2096 = vmatprep.subr.mxu0 0.0
    %2097 = vmatpush2.msra.mxu0 0.0
    %2098 = vmatprep.subr.mxu0 0.0
    %2099 = vmatpush2.msra.mxu0 0.0
    %2100 = vmatprep.subr.mxu0 0.0
    %2101 = vmatpush2.msra.mxu0 0.0
    %2102 = vmatprep.subr.mxu0 0.0
    %2103 = vmatpush2.msra.mxu0 0.0
    %2104 = vmatprep.subr.mxu0 0.0
    %2105 = vmatpush2.msra.mxu0 0.0
    %2106 = vmatprep.subr.mxu0 0.0
    %2107 = vmatpush2.msra.mxu0 0.0
    %2108 = vmatprep.subr.mxu0 0.0
    %2109 = vmatpush2.msra.mxu0 0.0
    %2110 = vmatprep.subr.mxu0 0.0
    %2111 = vmatpush2.msra.mxu0 0.0
    %2112 = vmatprep.subr.mxu0 0.0
    %2113 = vmatpush2.msra.mxu0 0.0
    %2114 = vmatprep.subr.mxu0 0.0
    %2115 = vmatpush2.msra.mxu0 0.0
    %2116 = vmatprep.subr.mxu0 0.0
    %2117 = vmatpush2.msra.mxu0 0.0
    %2118 = vmatprep.subr.mxu0 0.0
    %2119 = vmatpush2.msra.mxu0 0.0
    %2120 = vmatprep.mubr.f32.mxu0 0.0
    %2121 = vmatmul.mubr.f32.gmra.mxu0 %v2054
    %v2122 = vpop.f32.mrf.mxu0
    %v2123 = vadd.f32 %v2050, %v2122
    %v2124 = vpop.f32.mrf.mxu0
    %2125 = vdwg.mxu0
    %v2126 = vsub.f32 0.0, %v2123
    %v2127 = vmul.f32 %v2126, 1.442695
    %v2128 = vpow.pop %v2127
    %v2129 = vadd.f32 %v2128, 1.0
    %v2130 = vrcp.pop %v2129
    %vm2131 = vcmp.gt.f32.partialorder %v2123, 0.0
    %v2132 = vmin.f32 %v2123, 0.0
    %v2133 = vmul.f32 %v2132, 1.442695
    %v2134 = vpow.pop %v2133
    %v2135 = vsub.f32 %v2134, 1.0
    %v2136 = vsel %vm2131, %v2123, %v2135
    %v2137 = vmul.f32 %v2130, %v2136
    %v2138 = vsub.f32 1.0, %v2130
    %v2139 = vmul.f32 %v2138, %v2042
    %v2140 = vadd.f32 %v2137, %v2139
    %v2141 = vld [vmem:[%s8] sm:$0xff]
    %v2142 = vld [vmem:[%s8 + $0x8] sm:$0xff]
    %v2143 = vld [vmem:[%s9] sm:$0x1]
    %v2145 = vlaneseq
    %v2146 = vshrl.u32 %v2145, 7
    %v2147 = vsub.s32 0, %v2146
    %v2148 = vrot.slane %v2143, %v2147
    %v2151 = vsel %vm2052, %v2140, 0
    %2153 = vmatprep.subr.mxu0 0.0
    %2154 = vmatpush1.msra.mxu0 0.0
    %2155 = vmatprep.subr.mxu0 0.0
    %2156 = vmatpush1.msra.mxu0 0.0
    %2157 = vmatprep.subr.mxu0 0.0
    %2158 = vmatpush1.msra.mxu0 0.0
    %2159 = vmatprep.subr.mxu0 0.0
    %2160 = vmatpush1.msra.mxu0 0.0
    %2161 = vmatprep.subr.mxu0 0.0
    %2162 = vmatpush1.msra.mxu0 0.0
    %2163 = vmatprep.subr.mxu0 0.0
    %2164 = vmatpush1.msra.mxu0 0.0
    %2165 = vmatprep.subr.mxu0 0.0
    %2166 = vmatpush1.msra.mxu0 0.0
    %2167 = vmatprep.subr.mxu0 0.0
    %2168 = vmatpush1.msra.mxu0 0.0
    %2169 = vmatprep.subr.mxu0 0.0
    %2170 = vmatpush1.msra.mxu0 0.0
    %2171 = vmatprep.subr.mxu0 0.0
    %2172 = vmatpush1.msra.mxu0 0.0
    %2173 = vmatprep.subr.mxu0 0.0
    %2174 = vmatpush1.msra.mxu0 0.0
    %2175 = vmatprep.subr.mxu0 0.0
    %2176 = vmatpush1.msra.mxu0 0.0
    %2177 = vmatprep.subr.mxu0 0.0
    %2178 = vmatpush1.msra.mxu0 0.0
    %2179 = vmatprep.subr.mxu0 0.0
    %2180 = vmatpush1.msra.mxu0 0.0
    %2181 = vmatprep.subr.mxu0 0.0
    %2182 = vmatpush1.msra.mxu0 %v2142
    %2183 = vmatprep.subr.mxu0 0.0
    %2184 = vmatpush1.msra.mxu0 %v2141
    %2185 = vmatprep.subr.mxu0 0.0
    %2186 = vmatpush2.msra.mxu0 0.0
    %2187 = vmatprep.subr.mxu0 0.0
    %2188 = vmatpush2.msra.mxu0 0.0
    %2189 = vmatprep.subr.mxu0 0.0
    %2190 = vmatpush2.msra.mxu0 0.0
    %2191 = vmatprep.subr.mxu0 0.0
    %2192 = vmatpush2.msra.mxu0 0.0
    %2193 = vmatprep.subr.mxu0 0.0
    %2194 = vmatpush2.msra.mxu0 0.0
    %2195 = vmatprep.subr.mxu0 0.0
    %2196 = vmatpush2.msra.mxu0 0.0
    %2197 = vmatprep.subr.mxu0 0.0
    %2198 = vmatpush2.msra.mxu0 0.0
    %2199 = vmatprep.subr.mxu0 0.0
    %2200 = vmatpush2.msra.mxu0 0.0
    %2201 = vmatprep.subr.mxu0 0.0
    %2202 = vmatpush2.msra.mxu0 0.0
    %2203 = vmatprep.subr.mxu0 0.0
    %2204 = vmatpush2.msra.mxu0 0.0
    %2205 = vmatprep.subr.mxu0 0.0
    %2206 = vmatpush2.msra.mxu0 0.0
    %2207 = vmatprep.subr.mxu0 0.0
    %2208 = vmatpush2.msra.mxu0 0.0
    %2209 = vmatprep.subr.mxu0 0.0
    %2210 = vmatpush2.msra.mxu0 0.0
    %2211 = vmatprep.subr.mxu0 0.0
    %2212 = vmatpush2.msra.mxu0 0.0
    %2213 = vmatprep.subr.mxu0 0.0
    %2214 = vmatpush2.msra.mxu0 0.0
    %2215 = vmatprep.subr.mxu0 0.0
    %2216 = vmatpush2.msra.mxu0 0.0
    %2217 = vmatprep.mubr.f32.mxu0 0.0
    %2218 = vmatmul.mubr.f32.gmra.mxu0 %v2151
    %v2219 = vpop.f32.mrf.mxu0
    %v2220 = vadd.f32 %v2148, %v2219
    %v2221 = vpop.f32.mrf.mxu0
    %2222 = vdwg.mxu0
    %2223 = vst [vmem:[#allocation2] sm:$0x3] %v2220
    // Predicated region
    $region42: #{tpu_custom_call.1} parent=1 // pred_check
      _
    $region43: #{tpu_custom_call.1} parent=1 // pred_check_branch
      %2225 = sbr.rel (0) target = $region45
    $region44: #{tpu_custom_call.1} parent=1 // pred_region
      %s2227 = ssub.s32 32, 32
      %2228 = vsyncadd [#allocation3], %s2227
      %s2230 = sshll.u32 [#allocation2], 4
      %s2231 = int_to_ptr.vmem [resolvable:$true] %s2230
      %2233 = dma.vmem_to_hbm [thread:$0]  %s2231, 32, %s10, [#allocation3]
    $region45: #{tpu_custom_call.1} parent=1 // pred_fallthru
      _
    // Predicated region
    $region46: #{tpu_custom_call.1} parent=1 // pred_check
      _
    $region47: #{tpu_custom_call.1} parent=1 // pred_check_branch
      %2235 = sbr.rel (0) target = $region49
    $region48: #{tpu_custom_call.1} parent=1 // pred_region
      %2236 = dma.done [#allocation3], 32
    $region49: #{tpu_custom_call.1} parent=1 // pred_fallthru
      _
    %2237 = vsyncpa [#allocation3], 1

</llo_original>
